<compile_context>
chip_gen: v7x
topology: tpu7x:2x2x1
jax: 0.10.0
libtpu: 0.0.40
codegen_flags: <defaults>
</compile_context>

<pallas_src>
import jax
import jax.numpy as jnp
from jax import lax
from jax.experimental import pallas as pl
from jax.experimental.pallas import tpu as pltpu

EPS = 1e-6
_SQRT_2_OVER_PI = 0.7978845608028654


def _gelu_tanh(x):
    return 0.5 * x * (1.0 + jnp.tanh(_SQRT_2_OVER_PI * (x + 0.044715 * x * x * x)))


def _round_up(v, m):
    return (v + m - 1) // m * m


def _padded_tile_bytes(rows, cols, itemsize=4):
    """VMEM footprint of a (rows, cols) minor tile after (8, 128) padding."""
    return _round_up(max(rows, 1), 8) * _round_up(max(cols, 1), 128) * itemsize


def _make_proj_kernel(NB, C, M, H2, W):
    """One grid step = NB whole images.  H2 = H/2 output rows, Wo = W/2 output cols."""
    Wo = W // 2
    CM = C * M
    H2p = _round_up(H2, 8)          # sublane-aligned per-channel slab height in the scratch
    W2x = 2 * W                     # reshaped row width: [even input row | odd input row]
    inv_c = 1.0 / C
    # output-channel chunk for the selection matmul / store: keeps the live value <= a few KB
    cm_chunk = max(1, min(CM, max(8, 256 // H2p)))

    def kernel(x_ref, gamma_ref, beta_ref, w_ref, bias_ref, o_ref, fbuf_ref):
        # 0/1 column-selection matrix (w == 2*wo): the stride-2 downsample runs on the
        # otherwise idle MXU, so no lane-strided loads / gathers are needed anywhere.
        w_i = lax.broadcasted_iota(jnp.int32, (W, Wo), 0)
        wo_i = lax.broadcasted_iota(jnp.int32, (W, Wo), 1)
        sel = (w_i == 2 * wo_i).astype(jnp.float32)

        if H2 != H2p:
            # scratch pad rows are fed through the matmul (then dropped); keep them finite
            fbuf_ref[:, H2:, :] = jnp.zeros((CM, H2p - H2, W), jnp.float32)

        for nb in range(NB):
            # ---- pass 1: per-position channel statistics for LayerNorm2d -------------
            def stats_body(c, carry):
                s, ss = carry
                xc = x_ref[nb, c].astype(jnp.float32)
                return s + xc, ss + xc * xc

            zero = jnp.zeros((H2, W2x), jnp.float32)
            s, ss = lax.fori_loop(0, C, stats_body, (zero, zero))
            mu = s * inv_c
            var = ss * inv_c - mu * mu
            rstd = lax.rsqrt(var + EPS)

            # ---- pass 2: LN + GELU + 3x3 depthwise taps (full width) per channel -----
            def chan_body(c, carry):
                xc = x_ref[nb, c].astype(jnp.float32)
                y = (xc - mu) * (rstd * gamma_ref[c]) + beta_ref[c]
                y = _gelu_tanh(y)
                # row parity came for free from the (H, W) -> (H/2, 2W) reshape
                e = y[:, :W]        # y(2*ho,   w)
                o = y[:, W:]        # y(2*ho+1, w)
                zc = jnp.zeros((H2, 1), jnp.float32)
                e_m = jnp.concatenate([zc, e[:, :W - 1]], axis=1)   # y(2*ho,   w-1)
                e_p = jnp.concatenate([e[:, 1:], zc], axis=1)       # y(2*ho,   w+1)
                o_m = jnp.concatenate([zc, o[:, :W - 1]], axis=1)   # y(2*ho+1, w-1)
                o_p = jnp.concatenate([o[:, 1:], zc], axis=1)       # y(2*ho+1, w+1)
                for m in range(M):
                    cm = c * M + m                       # torch grouped order: o = c*M + m
                    base = cm * 9
                    w00 = w_ref[base + 0]; w01 = w_ref[base + 1]; w02 = w_ref[base + 2]
                    w10 = w_ref[base + 3]; w11 = w_ref[base + 4]; w12 = w_ref[base + 5]
                    w20 = w_ref[base + 6]; w21 = w_ref[base + 7]; w22 = w_ref[base + 8]
                    # bias folded into the accumulator init; kh=1 reads the even input row,
                    # kh=2 the odd input row of the same output row
                    acc = (w10 * e_m + w11 * e + w12 * e_p
                           + w20 * o_m + w21 * o + w22 * o_p
                           + bias_ref[cm])
                    # kh=0 reads the previous output row's odd input row (zero pad at top)
                    top = w00 * o_m + w01 * o + w02 * o_p
                    if H2 > 1:
                        top = jnp.concatenate(
                            [jnp.zeros((1, W), jnp.float32), top[:H2 - 1, :]], axis=0)
                    else:
                        top = jnp.zeros((H2, W), jnp.float32)
                    fbuf_ref[cm, pl.ds(0, H2), :] = acc + top
                return carry

            lax.fori_loop(0, C, chan_body, 0)

            # ---- pass 3: stride-2 column pick on the MXU + dense NCHW output stores --
            start = 0
            while start < CM:
                size = min(cm_chunk, CM - start)
                fb = fbuf_ref[start:start + size]            # (size, H2p, W)
                fb = fb.reshape(size * H2p, W)               # free: H2p % 8 == 0
                res = jnp.dot(fb, sel, preferred_element_type=jnp.float32,
                              precision=lax.Precision.HIGHEST)
                res = res.reshape(size, H2p, Wo)[:, :H2, :]
                o_ref[nb, start:start + size] = res.astype(o_ref.dtype)
                start += size

    return kernel


def depthwise_proj_pallas(x, gamma, beta, conv_weight, conv_bias, *, vmem_budget_bytes=None):
    """LayerNorm2d + GELU + depthwise 3x3 stride-2 grouped conv; NCHW in, NCHW out."""
    B, C, H, W = x.shape
    assert H % 2 == 0 and W % 2 == 0, "kernel path expects even spatial dims"
    Cout = conv_weight.shape[0]
    assert Cout % C == 0, "grouped conv requires output_channels % input_channels == 0"
    M = Cout // C
    H2, Wo = H // 2, W // 2
    H2p = _round_up(H2, 8)

    # free, metadata-only reshape: each output row's even/odd input rows land side by side
    # on the minor (lane) dim -- replaces v2's HBM round-trip space-to-batch transpose.
    x_r = x.reshape(B, C, H2, 2 * W)

    gamma_f = gamma.astype(jnp.float32).reshape(C)
    beta_f = beta.astype(jnp.float32).reshape(C)
    w_flat = conv_weight.astype(jnp.float32).reshape(Cout * 9)   # [(c*M+m)*9 + kh*3 + kw]
    bias_f = conv_bias.astype(jnp.float32).reshape(Cout)

    # ---- generation-aware VMEM budgeting (v5e/v6e: 128 MiB, v7x: 64 MiB per core) -------
    try:
        vmem_cap = int(pltpu.get_tpu_info().vmem_capacity_bytes)
    except Exception:
        vmem_cap = 64 << 20                                      # conservative; valid on all gens
    budget = (vmem_budget_bytes if vmem_budget_bytes is not None
              else min(96 << 20, int(0.5 * vmem_cap)))

    def vmem_need(nb):
        in_blk = nb * C * _padded_tile_bytes(H2, 2 * W)
        out_blk = nb * Cout * _padded_tile_bytes(H2, Wo)
        scratch = Cout * _padded_tile_bytes(H2p, W)
        return 2 * in_blk + 2 * out_blk + scratch + (1 << 20)    # double-buffered blocks

    # Block NB whole images per grid step, but keep >=2 grid steps whenever B >= 2 so the
    # "parallel" batch axis gives both v7x TensorCores work (no-op on v5e/v6e single-TC).
    NB = 1
    for nb in range(B, 0, -1):
        if B % nb != 0:
            continue
        if B >= 2 and B // nb < 2:
            continue
        if vmem_need(nb) <= budget:
            NB = nb
            break
    need = vmem_need(NB)
    vmem_limit = int(min(max(need * 1.3, 16 << 20), 0.85 * vmem_cap))

    kernel = _make_proj_kernel(NB, C, M, H2, W)
    out = pl.pallas_call(
        kernel,
        out_shape=jax.ShapeDtypeStruct((B, Cout, H2, Wo), x.dtype),
        grid=(B // NB,),
        in_specs=[
            pl.BlockSpec((NB, C, H2, 2 * W), lambda b: (b, 0, 0, 0)),
            pl.BlockSpec(memory_space=pltpu.MemorySpace.SMEM),   # LN gamma   (C,)
            pl.BlockSpec(memory_space=pltpu.MemorySpace.SMEM),   # LN beta    (C,)
            pl.BlockSpec(memory_space=pltpu.MemorySpace.SMEM),   # conv w     (C*M*9,)
            pl.BlockSpec(memory_space=pltpu.MemorySpace.SMEM),   # conv bias  (C*M,)
        ],
        # NCHW output written directly (no transpose back).  The VMEM store is lane-narrow
        # (Wo < 128) but the HBM DMA stays fully contiguous: the block spans all trailing dims.
        out_specs=pl.BlockSpec((NB, Cout, H2, Wo), lambda b: (b, 0, 0, 0)),
        scratch_shapes=[pltpu.VMEM((Cout, H2p, W), jnp.float32)],
        compiler_params=pltpu.CompilerParams(
            dimension_semantics=("parallel",),
            vmem_limit_bytes=vmem_limit),
    )(x_r, gamma_f, beta_f, w_flat, bias_f)
    return out


def xla_reference_proj(x, gamma, beta, conv_weight, conv_bias):
    """Pure-XLA mirror of the PyTorch module (also the fast path for tiny feature maps)."""
    C = x.shape[1]
    xh = jnp.transpose(x, (0, 2, 3, 1)).astype(jnp.float32)
    mu = xh.mean(-1, keepdims=True)
    var = ((xh - mu) ** 2).mean(-1, keepdims=True)
    y = (xh - mu) * lax.rsqrt(var + EPS) * gamma + beta
    y = jax.nn.gelu(y, approximate=True)
    rhs = jnp.transpose(conv_weight[:, 0, :, :], (1, 2, 0))[:, :, None, :].astype(jnp.float32)
    out = lax.conv_general_dilated(
        y, rhs, window_strides=(2, 2), padding=((1, 1), (1, 1)),
        dimension_numbers=("NHWC", "HWIO", "NHWC"), feature_group_count=C,
        precision=lax.Precision.HIGHEST)
    out = out + conv_bias
    return jnp.transpose(out, (0, 3, 1, 2)).astype(x.dtype)


_TINY_SPATIAL_ELEMS = 64   # <= 8x8 maps: fixed pallas_call overhead exceeds the whole op


def projection_forward(xs, gamma, beta, conv_weight, conv_bias):
    """Projection.forward: the same proj (shared parameters) applied to cls and patch."""
    def proj(x):
        if x.shape[2] * x.shape[3] <= _TINY_SPATIAL_ELEMS:
            # tiny cls maps (e.g. 4x4): plain XLA instead of a second pallas_call (per review)
            return xla_reference_proj(x, gamma, beta, conv_weight, conv_bias)
        return depthwise_proj_pallas(x, gamma, beta, conv_weight, conv_bias)

    cls_tokens, patch_tokens = xs
    return proj(cls_tokens), proj(patch_tokens)


if __name__ == "__main__":
    key = jax.random.PRNGKey(0)
    B, C, M = 2, 4, 2            # input_channels=4, output_channels=8 (groups=4)
    Cout = C * M
    k1, k2, k3, k4, k5, k6, k7 = jax.random.split(key, 7)

    cls_tokens = jax.random.normal(k1, (B, C, 4, 4), jnp.float32)
    patch_tokens = jax.random.normal(k2, (B, C, 16, 16), jnp.float32)

    # deterministic synthetic parameters (shapes match the PyTorch module)
    ln_gamma = 1.0 + 0.1 * jax.random.normal(k3, (C,), jnp.float32)
    ln_beta = 0.1 * jax.random.normal(k4, (C,), jnp.float32)
    conv_weight = 0.2 * jax.random.normal(k5, (Cout, 1, 3, 3), jnp.float32)  # torch layout
    conv_bias = 0.1 * jax.random.normal(k6, (Cout,), jnp.float32)

    cls_out, patch_out = projection_forward(
        (cls_tokens, patch_tokens), ln_gamma, ln_beta, conv_weight, conv_bias)
    jax.block_until_ready((cls_out, patch_out))

    ref_cls = xla_reference_proj(cls_tokens, ln_gamma, ln_beta, conv_weight, conv_bias)
    ref_patch = xla_reference_proj(patch_tokens, ln_gamma, ln_beta, conv_weight, conv_bias)
    assert cls_out.shape == (B, Cout, 2, 2) and patch_out.shape == (B, Cout, 8, 8)
    assert jnp.allclose(cls_out, ref_cls, atol=1e-4, rtol=1e-4)
    assert jnp.allclose(patch_out, ref_patch, atol=1e-4, rtol=1e-4)

    # extra kernel-path test: exercises NB>1 batch blocking and the H2 % 8 != 0 scratch
    # padding path (H2=6 -> slab padded to 8 rows; garbage pad rows dropped after the matmul)
    x2 = jax.random.normal(k7, (4, C, 12, 12), jnp.float32)
    out2 = depthwise_proj_pallas(x2, ln_gamma, ln_beta, conv_weight, conv_bias)
    jax.block_until_ready(out2)
    ref2 = xla_reference_proj(x2, ln_gamma, ln_beta, conv_weight, conv_bias)
    assert out2.shape == (4, Cout, 6, 6)
    assert jnp.allclose(out2, ref2, atol=1e-4, rtol=1e-4)

    print("KERNEL_OK")
</pallas_src>

<mosaic_0001>
module attributes {stable_mosaic.version = 11 : i64} {
  func.func @kernel(%arg0: i32, %arg1: memref<1x4x8x32xf32, #tpu.memory_space<vmem>>, %arg2: memref<4xf32, #tpu.memory_space<smem>>, %arg3: memref<4xf32, #tpu.memory_space<smem>>, %arg4: memref<72xf32, #tpu.memory_space<smem>>, %arg5: memref<8xf32, #tpu.memory_space<smem>>, %arg6: memref<1x8x8x8xf32, #tpu.memory_space<vmem>>, %arg7: memref<8x8x16xf32, #tpu.memory_space<vmem>>) attributes {dimension_semantics = [#tpu.dimension_semantics<parallel>], iteration_bounds = array<i64: 2>, scalar_prefetch = 0 : i64, scratch_operands = 1 : i64, tpu.core_type = #tpu.core_type<tc>, window_params = [{transform_indices = @transform_0, window_bounds = array<i64: 1, 4, 8, 32>}, {transform_indices = @transform_1, window_bounds = array<i64: 4>}, {transform_indices = @transform_2, window_bounds = array<i64: 4>}, {transform_indices = @transform_3, window_bounds = array<i64: 72>}, {transform_indices = @transform_4, window_bounds = array<i64: 8>}, {transform_indices = @transform_5, window_bounds = array<i64: 1, 8, 8, 8>}]} {
    %0 = tpu.iota {dimensions = array<i32: 0>} : vector<16x8xi32>
    %1 = tpu.iota {dimensions = array<i32: 1>} : vector<16x8xi32>
    %c2_i32 = arith.constant 2 : i32
    %2 = vector.broadcast %c2_i32 : i32 to vector<16x8xi32>
    %3 = arith.muli %2, %1 : vector<16x8xi32>
    %4 = arith.cmpi eq, %0, %3 : vector<16x8xi32>
    %5 = arith.extui %4 : vector<16x8xi1> to vector<16x8xi32>
    %6 = arith.sitofp %5 : vector<16x8xi32> to vector<16x8xf32>
    %cst = arith.constant 0.000000e+00 : f32
    %7 = vector.broadcast %cst : f32 to vector<8x32xf32>
    %c0_i32 = arith.constant 0 : i32
    %c4_i32 = arith.constant 4 : i32
    %8 = arith.addi %c0_i32, %c4_i32 : i32
    %c1_i32 = arith.constant 1 : i32
    %9:2 = scf.for %arg8 = %c0_i32 to %8 step %c1_i32 iter_args(%arg9 = %7, %arg10 = %7) -> (vector<8x32xf32>, vector<8x32xf32>)  : i32 {
      %c0_15 = arith.constant 0 : index
      %27 = arith.index_cast %arg8 : i32 to index
      %c0_16 = arith.constant 0 : index
      %c0_17 = arith.constant 0 : index
      %28 = vector.load %arg1[%c0_15, %27, %c0_16, %c0_17] : memref<1x4x8x32xf32, #tpu.memory_space<vmem>>, vector<1x1x8x32xf32>
      %29 = vector.shape_cast %28 : vector<1x1x8x32xf32> to vector<8x32xf32>
      %30 = arith.addf %arg9, %29 : vector<8x32xf32>
      %31 = arith.mulf %29, %29 : vector<8x32xf32>
      %32 = arith.addf %arg10, %31 : vector<8x32xf32>
      scf.yield %30, %32 : vector<8x32xf32>, vector<8x32xf32>
    }
    %c4_i32_0 = arith.constant 4 : i32
    %cst_1 = arith.constant 2.500000e-01 : f32
    %10 = vector.broadcast %cst_1 : f32 to vector<8x32xf32>
    %11 = arith.mulf %9#0, %10 : vector<8x32xf32>
    %cst_2 = arith.constant 2.500000e-01 : f32
    %12 = vector.broadcast %cst_2 : f32 to vector<8x32xf32>
    %13 = arith.mulf %9#1, %12 : vector<8x32xf32>
    %14 = arith.mulf %11, %11 : vector<8x32xf32>
    %15 = arith.subf %13, %14 : vector<8x32xf32>
    %cst_3 = arith.constant 9.99999997E-7 : f32
    %16 = vector.broadcast %cst_3 : f32 to vector<8x32xf32>
    %17 = arith.addf %15, %16 : vector<8x32xf32>
    %18 = math.rsqrt %17 : vector<8x32xf32>
    %c0_i32_4 = arith.constant 0 : i32
    %c4_i32_5 = arith.constant 4 : i32
    %19 = arith.addi %c0_i32_4, %c4_i32_5 : i32
    %c1_i32_6 = arith.constant 1 : i32
    scf.for %arg8 = %c0_i32_4 to %19 step %c1_i32_6  : i32 {
      %c0_15 = arith.constant 0 : index
      %27 = arith.index_cast %arg8 : i32 to index
      %c0_16 = arith.constant 0 : index
      %c0_17 = arith.constant 0 : index
      %28 = vector.load %arg1[%c0_15, %27, %c0_16, %c0_17] : memref<1x4x8x32xf32, #tpu.memory_space<vmem>>, vector<1x1x8x32xf32>
      %29 = vector.shape_cast %28 : vector<1x1x8x32xf32> to vector<8x32xf32>
      %30 = arith.subf %29, %11 : vector<8x32xf32>
      %31 = arith.index_cast %arg8 : i32 to index
      %32 = memref.load %arg2[%31] : memref<4xf32, #tpu.memory_space<smem>>
      %33 = vector.broadcast %32 : f32 to vector<8x32xf32>
      %34 = arith.mulf %18, %33 : vector<8x32xf32>
      %35 = arith.mulf %30, %34 : vector<8x32xf32>
      %36 = arith.index_cast %arg8 : i32 to index
      %37 = memref.load %arg3[%36] : memref<4xf32, #tpu.memory_space<smem>>
      %38 = vector.broadcast %37 : f32 to vector<8x32xf32>
      %39 = arith.addf %35, %38 : vector<8x32xf32>
      %cst_18 = arith.constant 5.000000e-01 : f32
      %40 = vector.broadcast %cst_18 : f32 to vector<8x32xf32>
      %41 = arith.mulf %40, %39 : vector<8x32xf32>
      %cst_19 = arith.constant 4.471500e-02 : f32
      %42 = vector.broadcast %cst_19 : f32 to vector<8x32xf32>
      %43 = arith.mulf %42, %39 : vector<8x32xf32>
      %44 = arith.mulf %43, %39 : vector<8x32xf32>
      %45 = arith.mulf %44, %39 : vector<8x32xf32>
      %46 = arith.addf %39, %45 : vector<8x32xf32>
      %cst_20 = arith.constant 0.797884583 : f32
      %47 = vector.broadcast %cst_20 : f32 to vector<8x32xf32>
      %48 = arith.mulf %47, %46 : vector<8x32xf32>
      %49 = math.tanh %48 : vector<8x32xf32>
      %cst_21 = arith.constant 1.000000e+00 : f32
      %50 = vector.broadcast %cst_21 : f32 to vector<8x32xf32>
      %51 = arith.addf %50, %49 : vector<8x32xf32>
      %52 = arith.mulf %41, %51 : vector<8x32xf32>
      %53 = vector.extract_strided_slice %52 {offsets = [0, 0], sizes = [8, 16], strides = [1, 1]} : vector<8x32xf32> to vector<8x16xf32>
      %54 = vector.extract_strided_slice %52 {offsets = [0, 16], sizes = [8, 16], strides = [1, 1]} : vector<8x32xf32> to vector<8x16xf32>
      %cst_22 = arith.constant 0.000000e+00 : f32
      %55 = vector.broadcast %cst_22 : f32 to vector<8x1xf32>
      %56 = vector.extract_strided_slice %53 {offsets = [0, 0], sizes = [8, 15], strides = [1, 1]} : vector<8x16xf32> to vector<8x15xf32>
      %57 = tpu.concatenate %55, %56 in 1 : vector<8x1xf32>, vector<8x15xf32> -> vector<8x16xf32>
      %58 = vector.extract_strided_slice %53 {offsets = [0, 1], sizes = [8, 15], strides = [1, 1]} : vector<8x16xf32> to vector<8x15xf32>
      %59 = tpu.concatenate %58, %55 in 1 : vector<8x15xf32>, vector<8x1xf32> -> vector<8x16xf32>
      %60 = vector.extract_strided_slice %54 {offsets = [0, 0], sizes = [8, 15], strides = [1, 1]} : vector<8x16xf32> to vector<8x15xf32>
      %61 = tpu.concatenate %55, %60 in 1 : vector<8x1xf32>, vector<8x15xf32> -> vector<8x16xf32>
      %62 = vector.extract_strided_slice %54 {offsets = [0, 1], sizes = [8, 15], strides = [1, 1]} : vector<8x16xf32> to vector<8x15xf32>
      %63 = tpu.concatenate %62, %55 in 1 : vector<8x15xf32>, vector<8x1xf32> -> vector<8x16xf32>
      %c2_i32_23 = arith.constant 2 : i32
      %64 = arith.muli %arg8, %c2_i32_23 : i32
      %c0_i32_24 = arith.constant 0 : i32
      %65 = arith.addi %64, %c0_i32_24 : i32
      %c9_i32 = arith.constant 9 : i32
      %66 = arith.muli %65, %c9_i32 : i32
      %c0_i32_25 = arith.constant 0 : i32
      %67 = arith.addi %66, %c0_i32_25 : i32
      %68 = arith.index_cast %67 : i32 to index
      %69 = memref.load %arg4[%68] : memref<72xf32, #tpu.memory_space<smem>>
      %c1_i32_26 = arith.constant 1 : i32
      %70 = arith.addi %66, %c1_i32_26 : i32
      %71 = arith.index_cast %70 : i32 to index
      %72 = memref.load %arg4[%71] : memref<72xf32, #tpu.memory_space<smem>>
      %c2_i32_27 = arith.constant 2 : i32
      %73 = arith.addi %66, %c2_i32_27 : i32
      %74 = arith.index_cast %73 : i32 to index
      %75 = memref.load %arg4[%74] : memref<72xf32, #tpu.memory_space<smem>>
      %c3_i32 = arith.constant 3 : i32
      %76 = arith.addi %66, %c3_i32 : i32
      %77 = arith.index_cast %76 : i32 to index
      %78 = memref.load %arg4[%77] : memref<72xf32, #tpu.memory_space<smem>>
      %c4_i32_28 = arith.constant 4 : i32
      %79 = arith.addi %66, %c4_i32_28 : i32
      %80 = arith.index_cast %79 : i32 to index
      %81 = memref.load %arg4[%80] : memref<72xf32, #tpu.memory_space<smem>>
      %c5_i32 = arith.constant 5 : i32
      %82 = arith.addi %66, %c5_i32 : i32
      %83 = arith.index_cast %82 : i32 to index
      %84 = memref.load %arg4[%83] : memref<72xf32, #tpu.memory_space<smem>>
      %c6_i32 = arith.constant 6 : i32
      %85 = arith.addi %66, %c6_i32 : i32
      %86 = arith.index_cast %85 : i32 to index
      %87 = memref.load %arg4[%86] : memref<72xf32, #tpu.memory_space<smem>>
      %c7_i32 = arith.constant 7 : i32
      %88 = arith.addi %66, %c7_i32 : i32
      %89 = arith.index_cast %88 : i32 to index
      %90 = memref.load %arg4[%89] : memref<72xf32, #tpu.memory_space<smem>>
      %c8_i32 = arith.constant 8 : i32
      %91 = arith.addi %66, %c8_i32 : i32
      %92 = arith.index_cast %91 : i32 to index
      %93 = memref.load %arg4[%92] : memref<72xf32, #tpu.memory_space<smem>>
      %94 = vector.broadcast %78 : f32 to vector<8x16xf32>
      %95 = arith.mulf %94, %57 : vector<8x16xf32>
      %96 = vector.broadcast %81 : f32 to vector<8x16xf32>
      %97 = arith.mulf %96, %53 : vector<8x16xf32>
      %98 = arith.addf %95, %97 : vector<8x16xf32>
      %99 = vector.broadcast %84 : f32 to vector<8x16xf32>
      %100 = arith.mulf %99, %59 : vector<8x16xf32>
      %101 = arith.addf %98, %100 : vector<8x16xf32>
      %102 = vector.broadcast %87 : f32 to vector<8x16xf32>
      %103 = arith.mulf %102, %61 : vector<8x16xf32>
      %104 = arith.addf %101, %103 : vector<8x16xf32>
      %105 = vector.broadcast %90 : f32 to vector<8x16xf32>
      %106 = arith.mulf %105, %54 : vector<8x16xf32>
      %107 = arith.addf %104, %106 : vector<8x16xf32>
      %108 = vector.broadcast %93 : f32 to vector<8x16xf32>
      %109 = arith.mulf %108, %63 : vector<8x16xf32>
      %110 = arith.addf %107, %109 : vector<8x16xf32>
      %111 = arith.index_cast %65 : i32 to index
      %112 = memref.load %arg5[%111] : memref<8xf32, #tpu.memory_space<smem>>
      %113 = vector.broadcast %112 : f32 to vector<8x16xf32>
      %114 = arith.addf %110, %113 : vector<8x16xf32>
      %115 = vector.broadcast %69 : f32 to vector<8x16xf32>
      %116 = arith.mulf %115, %61 : vector<8x16xf32>
      %117 = vector.broadcast %72 : f32 to vector<8x16xf32>
      %118 = arith.mulf %117, %54 : vector<8x16xf32>
      %119 = arith.addf %116, %118 : vector<8x16xf32>
      %120 = vector.broadcast %75 : f32 to vector<8x16xf32>
      %121 = arith.mulf %120, %63 : vector<8x16xf32>
      %122 = arith.addf %119, %121 : vector<8x16xf32>
      %cst_29 = arith.constant 0.000000e+00 : f32
      %123 = vector.broadcast %cst_29 : f32 to vector<1x16xf32>
      %124 = vector.extract_strided_slice %122 {offsets = [0, 0], sizes = [7, 16], strides = [1, 1]} : vector<8x16xf32> to vector<7x16xf32>
      %125 = tpu.concatenate %123, %124 in 0 : vector<1x16xf32>, vector<7x16xf32> -> vector<8x16xf32>
      %126 = arith.addf %114, %125 : vector<8x16xf32>
      %127 = arith.index_cast %65 : i32 to index
      %c0_30 = arith.constant 0 : index
      %c0_31 = arith.constant 0 : index
      %128 = vector.load %arg7[%127, %c0_30, %c0_31] : memref<8x8x16xf32, #tpu.memory_space<vmem>>, vector<1x8x16xf32>
      %129 = vector.shape_cast %128 : vector<1x8x16xf32> to vector<8x16xf32>
      %130 = vector.shape_cast %126 : vector<8x16xf32> to vector<1x8x16xf32>
      tpu.vector_store %arg7[%127, %c0_30, %c0_31], %130 {strides = array<i32>} : memref<8x8x16xf32, #tpu.memory_space<vmem>>, vector<1x8x16xf32>,
      %c2_i32_32 = arith.constant 2 : i32
      %131 = arith.muli %arg8, %c2_i32_32 : i32
      %c1_i32_33 = arith.constant 1 : i32
      %132 = arith.addi %131, %c1_i32_33 : i32
      %c9_i32_34 = arith.constant 9 : i32
      %133 = arith.muli %132, %c9_i32_34 : i32
      %c0_i32_35 = arith.constant 0 : i32
      %134 = arith.addi %133, %c0_i32_35 : i32
      %135 = arith.index_cast %134 : i32 to index
      %136 = memref.load %arg4[%135] : memref<72xf32, #tpu.memory_space<smem>>
      %c1_i32_36 = arith.constant 1 : i32
      %137 = arith.addi %133, %c1_i32_36 : i32
      %138 = arith.index_cast %137 : i32 to index
      %139 = memref.load %arg4[%138] : memref<72xf32, #tpu.memory_space<smem>>
      %c2_i32_37 = arith.constant 2 : i32
      %140 = arith.addi %133, %c2_i32_37 : i32
      %141 = arith.index_cast %140 : i32 to index
      %142 = memref.load %arg4[%141] : memref<72xf32, #tpu.memory_space<smem>>
      %c3_i32_38 = arith.constant 3 : i32
      %143 = arith.addi %133, %c3_i32_38 : i32
      %144 = arith.index_cast %143 : i32 to index
      %145 = memref.load %arg4[%144] : memref<72xf32, #tpu.memory_space<smem>>
      %c4_i32_39 = arith.constant 4 : i32
      %146 = arith.addi %133, %c4_i32_39 : i32
      %147 = arith.index_cast %146 : i32 to index
      %148 = memref.load %arg4[%147] : memref<72xf32, #tpu.memory_space<smem>>
      %c5_i32_40 = arith.constant 5 : i32
      %149 = arith.addi %133, %c5_i32_40 : i32
      %150 = arith.index_cast %149 : i32 to index
      %151 = memref.load %arg4[%150] : memref<72xf32, #tpu.memory_space<smem>>
      %c6_i32_41 = arith.constant 6 : i32
      %152 = arith.addi %133, %c6_i32_41 : i32
      %153 = arith.index_cast %152 : i32 to index
      %154 = memref.load %arg4[%153] : memref<72xf32, #tpu.memory_space<smem>>
      %c7_i32_42 = arith.constant 7 : i32
      %155 = arith.addi %133, %c7_i32_42 : i32
      %156 = arith.index_cast %155 : i32 to index
      %157 = memref.load %arg4[%156] : memref<72xf32, #tpu.memory_space<smem>>
      %c8_i32_43 = arith.constant 8 : i32
      %158 = arith.addi %133, %c8_i32_43 : i32
      %159 = arith.index_cast %158 : i32 to index
      %160 = memref.load %arg4[%159] : memref<72xf32, #tpu.memory_space<smem>>
      %161 = vector.broadcast %145 : f32 to vector<8x16xf32>
      %162 = arith.mulf %161, %57 : vector<8x16xf32>
      %163 = vector.broadcast %148 : f32 to vector<8x16xf32>
      %164 = arith.mulf %163, %53 : vector<8x16xf32>
      %165 = arith.addf %162, %164 : vector<8x16xf32>
      %166 = vector.broadcast %151 : f32 to vector<8x16xf32>
      %167 = arith.mulf %166, %59 : vector<8x16xf32>
      %168 = arith.addf %165, %167 : vector<8x16xf32>
      %169 = vector.broadcast %154 : f32 to vector<8x16xf32>
      %170 = arith.mulf %169, %61 : vector<8x16xf32>
      %171 = arith.addf %168, %170 : vector<8x16xf32>
      %172 = vector.broadcast %157 : f32 to vector<8x16xf32>
      %173 = arith.mulf %172, %54 : vector<8x16xf32>
      %174 = arith.addf %171, %173 : vector<8x16xf32>
      %175 = vector.broadcast %160 : f32 to vector<8x16xf32>
      %176 = arith.mulf %175, %63 : vector<8x16xf32>
      %177 = arith.addf %174, %176 : vector<8x16xf32>
      %178 = arith.index_cast %132 : i32 to index
      %179 = memref.load %arg5[%178] : memref<8xf32, #tpu.memory_space<smem>>
      %180 = vector.broadcast %179 : f32 to vector<8x16xf32>
      %181 = arith.addf %177, %180 : vector<8x16xf32>
      %182 = vector.broadcast %136 : f32 to vector<8x16xf32>
      %183 = arith.mulf %182, %61 : vector<8x16xf32>
      %184 = vector.broadcast %139 : f32 to vector<8x16xf32>
      %185 = arith.mulf %184, %54 : vector<8x16xf32>
      %186 = arith.addf %183, %185 : vector<8x16xf32>
      %187 = vector.broadcast %142 : f32 to vector<8x16xf32>
      %188 = arith.mulf %187, %63 : vector<8x16xf32>
      %189 = arith.addf %186, %188 : vector<8x16xf32>
      %cst_44 = arith.constant 0.000000e+00 : f32
      %190 = vector.broadcast %cst_44 : f32 to vector<1x16xf32>
      %191 = vector.extract_strided_slice %189 {offsets = [0, 0], sizes = [7, 16], strides = [1, 1]} : vector<8x16xf32> to vector<7x16xf32>
      %192 = tpu.concatenate %190, %191 in 0 : vector<1x16xf32>, vector<7x16xf32> -> vector<8x16xf32>
      %193 = arith.addf %181, %192 : vector<8x16xf32>
      %194 = arith.index_cast %132 : i32 to index
      %c0_45 = arith.constant 0 : index
      %c0_46 = arith.constant 0 : index
      %195 = vector.load %arg7[%194, %c0_45, %c0_46] : memref<8x8x16xf32, #tpu.memory_space<vmem>>, vector<1x8x16xf32>
      %196 = vector.shape_cast %195 : vector<1x8x16xf32> to vector<8x16xf32>
      %197 = vector.shape_cast %193 : vector<8x16xf32> to vector<1x8x16xf32>
      tpu.vector_store %arg7[%194, %c0_45, %c0_46], %197 {strides = array<i32>} : memref<8x8x16xf32, #tpu.memory_space<vmem>>, vector<1x8x16xf32>,
    }
    %c4_i32_7 = arith.constant 4 : i32
    %c0 = arith.constant 0 : index
    %c0_8 = arith.constant 0 : index
    %c0_9 = arith.constant 0 : index
    %20 = vector.load %arg7[%c0, %c0_8, %c0_9] : memref<8x8x16xf32, #tpu.memory_space<vmem>>, vector<8x8x16xf32>
    %21 = vector.shape_cast %20 : vector<8x8x16xf32> to vector<64x16xf32>
    %cst_10 = arith.constant dense<0.000000e+00> : vector<64x8xf32>
    %22 = tpu.matmul %21, %6, %cst_10 {dimension_numbers = #tpu.dot_dimension_numbers<[1], [0], [0], [1], [0, 0, 1, 1], [], []>, precision = #tpu.contract_precision<fp32>} : vector<64x16xf32>, vector<16x8xf32>, vector<64x8xf32> -> vector<64x8xf32>
    %23 = vector.shape_cast %22 : vector<64x8xf32> to vector<8x8x8xf32>
    %c0_11 = arith.constant 0 : index
    %c0_12 = arith.constant 0 : index
    %c0_13 = arith.constant 0 : index
    %c0_14 = arith.constant 0 : index
    %24 = vector.load %arg6[%c0_11, %c0_12, %c0_13, %c0_14] : memref<1x8x8x8xf32, #tpu.memory_space<vmem>>, vector<1x8x8x8xf32>
    %25 = vector.shape_cast %24 : vector<1x8x8x8xf32> to vector<8x8x8xf32>
    %26 = vector.shape_cast %23 : vector<8x8x8xf32> to vector<1x8x8x8xf32>
    tpu.vector_store %arg6[%c0_11, %c0_12, %c0_13, %c0_14], %26 {strides = array<i32>} : memref<1x8x8x8xf32, #tpu.memory_space<vmem>>, vector<1x8x8x8xf32>,
    return
  }
  func.func @transform_0(%arg0: i32) -> (i32, i32, i32, i32) {
    %c0_i32 = arith.constant 0 : i32
    %c0_i32_0 = arith.constant 0 : i32
    %c0_i32_1 = arith.constant 0 : i32
    %c0_i32_2 = arith.constant 0 : i32
    return %arg0, %c0_i32, %c0_i32_0, %c0_i32_1 : i32, i32, i32, i32
  }
  func.func @transform_1(%arg0: i32) -> i32 {
    %c0_i32 = arith.constant 0 : i32
    %c0_i32_0 = arith.constant 0 : i32
    return %c0_i32 : i32
  }
  func.func @transform_2(%arg0: i32) -> i32 {
    %c0_i32 = arith.constant 0 : i32
    %c0_i32_0 = arith.constant 0 : i32
    return %c0_i32 : i32
  }
  func.func @transform_3(%arg0: i32) -> i32 {
    %c0_i32 = arith.constant 0 : i32
    %c0_i32_0 = arith.constant 0 : i32
    return %c0_i32 : i32
  }
  func.func @transform_4(%arg0: i32) -> i32 {
    %c0_i32 = arith.constant 0 : i32
    %c0_i32_0 = arith.constant 0 : i32
    return %c0_i32 : i32
  }
  func.func @transform_5(%arg0: i32) -> (i32, i32, i32, i32) {
    %c0_i32 = arith.constant 0 : i32
    %c0_i32_0 = arith.constant 0 : i32
    %c0_i32_1 = arith.constant 0 : i32
    %c0_i32_2 = arith.constant 0 : i32
    return %arg0, %c0_i32, %c0_i32_0, %c0_i32_1 : i32, i32, i32, i32
  }
}

</mosaic_0001>

<llo_original>
// kernel: tpu_custom_call.1
$region0: #{tpu_custom_call.1}
  #allocation0 [shape = 'u32[]', space=smem, size = 0x4, offset = 0x4, fixed_abs, tag = 'smem constant byte address 0x4 - core index']
  #allocation1 [shape = 'u32[144,128]{1,0:T(1,128)}', space=vmem, size = 0x12000, scoped, tag = 'internal scratch']
  #allocation2 [shape = 'f32[8,8,16]{2,1,0:T(8,128)}', space=vmem, size = 0x8000, scoped, tag = 'scratch operand']
  %s0 = inlined_call_operand.hbm [shape: f32[2,4,8,32], index: 0, kind: input, shape index: {}]
  %s1 = inlined_call_operand.vmem [shape: f32[4], index: 1, kind: input, shape index: {}]
  %s2 = inlined_call_operand.vmem [shape: f32[4], index: 2, kind: input, shape index: {}]
  %s3 = inlined_call_operand.vmem [shape: f32[72], index: 3, kind: input, shape index: {}]
  %s4 = inlined_call_operand.vmem [shape: f32[8], index: 4, kind: input, shape index: {}]
  %s5 = inlined_call_operand.hbm [shape: f32[2,8,8,8], index: 5, kind: output, shape index: {}]
  %s6 = sld [smem:[#allocation0]]
  $region87: #{tpu_custom_call.1} parent=0
    _
  %s8 = ssub.s32 1, %s6
  %s9 = scalar_select 0, %s8, %s6
  $region1: #{tpu_custom_call.1} parent=0
    #allocation3 [shape = 'u8[32768]{0}', space=vmem, size = 0x8000, scoped, tag = 'input window, operand 0']
    #allocation4 [shape = 's32[2]{0}', space=sflag, size = 0x8, scoped, tag = 'scoped memory for tpu_custom_call.1']
    #allocation5 [shape = 's32[2]{0}', space=sflag, size = 0x8, scoped, tag = 'scoped memory for tpu_custom_call.1']
    #allocation6 [shape = 's32[2]{0}', space=sflag, size = 0x8, scoped, tag = 'scoped memory for tpu_custom_call.1']
    #allocation7 [shape = 'u8[512]{0}', space=smem, size = 0x200, scoped, tag = 'input window, operand 1, single buffered']
    #allocation8 [shape = 'u8[512]{0}', space=smem, size = 0x200, scoped, tag = 'input window, operand 2, single buffered']
    #allocation9 [shape = 's32[1]{0}', space=sflag, size = 0x4, scoped, tag = 'scoped memory for tpu_custom_call.1']
    #allocation10 [shape = 'u8[512]{0}', space=smem, size = 0x200, scoped, tag = 'input window, operand 3, single buffered']
    #allocation11 [shape = 'u8[512]{0}', space=smem, size = 0x200, scoped, tag = 'input window, operand 4, single buffered']
    #allocation12 [shape = 's32[1]{0}', space=sflag, size = 0x4, scoped, tag = 'scoped memory for tpu_custom_call.1']
    #allocation13 [shape = 'u8[65536]{0}', space=vmem, size = 0x10000, scoped, tag = 'output window, operand 0']
    %10 = vsyncpa [#allocation4], 0
    %s11 = scalar_lea.sflag [#allocation4], 1
    %12 = vsyncpa %s11, 0
    %13 = vsyncpa [#allocation6], 0
    %14 = vsyncpa [#allocation9], 0
    %15 = vsyncpa [#allocation12], 0
    %16 = vsyncpa [#allocation5], 0
    %s17 = scalar_lea.sflag [#allocation5], 1
    %18 = vsyncpa %s17, 0
    loop: start=0, step=1, limit=4
    $region2: #{tpu_custom_call.1} parent=1 // loop_pre_header
      _
    $region3: #{tpu_custom_call.1} parent=1 // loop_header
      %s20 = sphi 0, %s24
      %p21 = scmp.ge.s32.totalorder %s20, 4
      %s30 = sphi 0, %s32
      %s33 = sphi 0, %s30
      %s34 = sphi 0, %s33
      %s50 = sphi 0, %s34
      %s54 = sphi 0, %s54
      %s56 = sphi 0, %s54
      %s57 = sphi 0, %s56
      %s71 = sphi 0, %s57
      %s75 = sphi 0, %s75
      %s77 = sphi 0, %s75
      %s78 = sphi 0, %s77
      %s92 = sphi 0, %s78
      %s96 = sphi 0, %s96
      %s98 = sphi 0, %s96
      %s99 = sphi 0, %s98
      %s113 = sphi 0, %s99
      %s117 = sphi 0, %s117
      %s119 = sphi 0, %s117
      %s120 = sphi 0, %s119
      %s134 = sphi 0, %s120
      %s140 = sphi 0, %s142
      %s143 = sphi 0, %s140
      %s144 = sphi 0, %s143
      %s160 = sphi 0, %s144
    $region4: #{tpu_custom_call.1} parent=1 // loop_header_branch
      %23 = sbr.rel (%p21) target = $region8
    $region5: #{tpu_custom_call.1} parent=1 // loop_body
      %s25 = ssub.s32 %s20, 1
      %s26 = ssub.s32 %s20, 2
      %s27 = sadd.s32 %s20, 1
      %s28 = ssub.s32 %s20, %s27
      %p29 = scmp.eq.s32.totalorder %s28, 0
      %s31 = sadd.s32 %s30, 1
      %s32 = scalar_select %p29, %s30, %s31
      %p35 = pneg %p29
      %p36 = scmp.eq.s32.totalorder %s20, 1
      %p37 = por %p35, %p36
      %p38 = scmp.ne.s32.totalorder %s30, %s33
      %p39 = scmp.eq.s32.totalorder %s20, 0
      %p40 = por %p38, %p39
      %p41 = scmp.ne.s32.totalorder %s30, %s33
      %p42 = scmp.eq.s32.totalorder %s25, 1
      %p43 = por %p41, %p42
      %p44 = scmp.ne.s32.totalorder %s33, %s34
      %p45 = scmp.eq.s32.totalorder %s25, 0
      %p46 = por %p44, %p45
      %p47 = scmp.ne.s32.totalorder %s33, %s34
      %p48 = scmp.eq.s32.totalorder %s26, 1
      %p49 = por %p47, %p48
      %p51 = scmp.ne.s32.totalorder %s34, %s50
      %p52 = scmp.eq.s32.totalorder %s26, 0
      %p53 = por %p51, %p52
      %s55 = sadd.s32 %s54, 1
      %p58 = scmp.eq.s32.totalorder %s20, 1
      %p59 = scmp.ne.s32.totalorder %s54, %s56
      %p60 = scmp.eq.s32.totalorder %s20, 0
      %p61 = por %p59, %p60
      %p62 = scmp.ne.s32.totalorder %s54, %s56
      %p63 = scmp.eq.s32.totalorder %s25, 1
      %p64 = por %p62, %p63
      %p65 = scmp.ne.s32.totalorder %s56, %s57
      %p66 = scmp.eq.s32.totalorder %s25, 0
      %p67 = por %p65, %p66
      %p68 = scmp.ne.s32.totalorder %s56, %s57
      %p69 = scmp.eq.s32.totalorder %s26, 1
      %p70 = por %p68, %p69
      %p72 = scmp.ne.s32.totalorder %s57, %s71
      %p73 = scmp.eq.s32.totalorder %s26, 0
      %p74 = por %p72, %p73
      %s76 = sadd.s32 %s75, 1
      %p79 = scmp.eq.s32.totalorder %s20, 1
      %p80 = scmp.ne.s32.totalorder %s75, %s77
      %p81 = scmp.eq.s32.totalorder %s20, 0
      %p82 = por %p80, %p81
      %p83 = scmp.ne.s32.totalorder %s75, %s77
      %p84 = scmp.eq.s32.totalorder %s25, 1
      %p85 = por %p83, %p84
      %p86 = scmp.ne.s32.totalorder %s77, %s78
      %p87 = scmp.eq.s32.totalorder %s25, 0
      %p88 = por %p86, %p87
      %p89 = scmp.ne.s32.totalorder %s77, %s78
      %p90 = scmp.eq.s32.totalorder %s26, 1
      %p91 = por %p89, %p90
      %p93 = scmp.ne.s32.totalorder %s78, %s92
      %p94 = scmp.eq.s32.totalorder %s26, 0
      %p95 = por %p93, %p94
      %s97 = sadd.s32 %s96, 1
      %p100 = scmp.eq.s32.totalorder %s20, 1
      %p101 = scmp.ne.s32.totalorder %s96, %s98
      %p102 = scmp.eq.s32.totalorder %s20, 0
      %p103 = por %p101, %p102
      %p104 = scmp.ne.s32.totalorder %s96, %s98
      %p105 = scmp.eq.s32.totalorder %s25, 1
      %p106 = por %p104, %p105
      %p107 = scmp.ne.s32.totalorder %s98, %s99
      %p108 = scmp.eq.s32.totalorder %s25, 0
      %p109 = por %p107, %p108
      %p110 = scmp.ne.s32.totalorder %s98, %s99
      %p111 = scmp.eq.s32.totalorder %s26, 1
      %p112 = por %p110, %p111
      %p114 = scmp.ne.s32.totalorder %s99, %s113
      %p115 = scmp.eq.s32.totalorder %s26, 0
      %p116 = por %p114, %p115
      %s118 = sadd.s32 %s117, 1
      %p121 = scmp.eq.s32.totalorder %s20, 1
      %p122 = scmp.ne.s32.totalorder %s117, %s119
      %p123 = scmp.eq.s32.totalorder %s20, 0
      %p124 = por %p122, %p123
      %p125 = scmp.ne.s32.totalorder %s117, %s119
      %p126 = scmp.eq.s32.totalorder %s25, 1
      %p127 = por %p125, %p126
      %p128 = scmp.ne.s32.totalorder %s119, %s120
      %p129 = scmp.eq.s32.totalorder %s25, 0
      %p130 = por %p128, %p129
      %p131 = scmp.ne.s32.totalorder %s119, %s120
      %p132 = scmp.eq.s32.totalorder %s26, 1
      %p133 = por %p131, %p132
      %p135 = scmp.ne.s32.totalorder %s120, %s134
      %p136 = scmp.eq.s32.totalorder %s26, 0
      %p137 = por %p135, %p136
      %s138 = ssub.s32 %s20, %s27
      %p139 = scmp.eq.s32.totalorder %s138, 0
      %s141 = sadd.s32 %s140, 1
      %s142 = scalar_select %p139, %s140, %s141
      %p145 = pneg %p139
      %p146 = scmp.eq.s32.totalorder %s20, 1
      %p147 = por %p145, %p146
      %p148 = scmp.ne.s32.totalorder %s140, %s143
      %p149 = scmp.eq.s32.totalorder %s20, 0
      %p150 = por %p148, %p149
      %p151 = scmp.ne.s32.totalorder %s140, %s143
      %p152 = scmp.eq.s32.totalorder %s25, 1
      %p153 = por %p151, %p152
      %p154 = scmp.ne.s32.totalorder %s143, %s144
      %p155 = scmp.eq.s32.totalorder %s25, 0
      %p156 = por %p154, %p155
      %p157 = scmp.ne.s32.totalorder %s143, %s144
      %p158 = scmp.eq.s32.totalorder %s26, 1
      %p159 = por %p157, %p158
      %p161 = scmp.ne.s32.totalorder %s144, %s160
      %p162 = scmp.eq.s32.totalorder %s26, 0
      %p163 = por %p161, %p162
      %p164 = scmp.le.s32.totalorder 1, %s20
      %p165 = scmp.lt.s32.totalorder %s20, 3
      %p166 = pnand %p164, %p165
      %p167 = pneg %p166
      // Predicated region
      $region9: #{tpu_custom_call.1} parent=5 // pred_check
        _
      $region10: #{tpu_custom_call.1} parent=5 // pred_check_branch
        %169 = sbr.rel (%p166) target = $region12
      $region11: #{tpu_custom_call.1} parent=5 // pred_region
        %s170 = ssub.s32 %s20, 1
        // Predicated region
        $region13: #{tpu_custom_call.1} parent=11 // pred_check
          %p171 = pneg %p67
        $region14: #{tpu_custom_call.1} parent=11 // pred_check_branch
          %173 = sbr.rel (%p171) target = $region16
        $region15: #{tpu_custom_call.1} parent=11 // pred_region
          %s175 = ssub.s32 16, 16
          %176 = vsyncadd [#allocation6], %s175
          %s178 = sshll.u32 %s1, 4
          %s179 = int_to_ptr.vmem [resolvable:$true] %s178
          %181 = dma.vmem_to_smem %s179, 16, [#allocation7], [#allocation6]
        $region16: #{tpu_custom_call.1} parent=11 // pred_fallthru
          _
        // Predicated region
        $region17: #{tpu_custom_call.1} parent=11 // pred_check
          %p182 = pneg %p88
        $region18: #{tpu_custom_call.1} parent=11 // pred_check_branch
          %184 = sbr.rel (%p182) target = $region20
        $region19: #{tpu_custom_call.1} parent=11 // pred_region
          %s186 = ssub.s32 16, 16
          %187 = vsyncadd [#allocation9], %s186
          %s189 = sshll.u32 %s2, 4
          %s190 = int_to_ptr.vmem [resolvable:$true] %s189
          %192 = dma.vmem_to_smem %s190, 16, [#allocation8], [#allocation9]
        $region20: #{tpu_custom_call.1} parent=11 // pred_fallthru
          _
        // Predicated region
        $region21: #{tpu_custom_call.1} parent=11 // pred_check
          %p193 = pneg %p109
        $region22: #{tpu_custom_call.1} parent=11 // pred_check_branch
          %195 = sbr.rel (%p193) target = $region24
        $region23: #{tpu_custom_call.1} parent=11 // pred_region
          %s197 = ssub.s32 16, 16
          %198 = vsyncadd [#allocation9], %s197
          %s200 = sshll.u32 %s3, 4
          %s201 = int_to_ptr.vmem [resolvable:$true] %s200
          %203 = dma.vmem_to_smem %s201, 16, [#allocation10], [#allocation9]
        $region24: #{tpu_custom_call.1} parent=11 // pred_fallthru
          _
        // Predicated region
        $region25: #{tpu_custom_call.1} parent=11 // pred_check
          %p204 = pneg %p130
        $region26: #{tpu_custom_call.1} parent=11 // pred_check_branch
          %206 = sbr.rel (%p204) target = $region28
        $region27: #{tpu_custom_call.1} parent=11 // pred_region
          %s208 = ssub.s32 16, 16
          %209 = vsyncadd [#allocation12], %s208
          %s211 = sshll.u32 %s4, 4
          %s212 = int_to_ptr.vmem [resolvable:$true] %s211
          %214 = dma.vmem_to_smem %s212, 16, [#allocation11], [#allocation12]
        $region28: #{tpu_custom_call.1} parent=11 // pred_fallthru
          _
      $region12: #{tpu_custom_call.1} parent=5 // pred_fallthru
        _
      %p215 = scmp.lt.s32.totalorder %s20, 2
      // Predicated region
      $region29: #{tpu_custom_call.1} parent=5 // pred_check
        %p216 = pneg %p215
      $region30: #{tpu_custom_call.1} parent=5 // pred_check_branch
        %218 = sbr.rel (%p216) target = $region32
      $region31: #{tpu_custom_call.1} parent=5 // pred_region
        // Predicated region
        $region33: #{tpu_custom_call.1} parent=31 // pred_check
          %p219 = pneg %p40
        $region34: #{tpu_custom_call.1} parent=31 // pred_check_branch
          %221 = sbr.rel (%p219) target = $region36
        $region35: #{tpu_custom_call.1} parent=31 // pred_region
          %s222 = sand.u32 %s30, 1
          %s223 = scalar_lea.sflag [#allocation4], %s222
          %s224 = sand.u32 %s30, 1
          %s225 = smul.addr %s224, 32
          %s226 = scalar_lea.vmem [#allocation3], %s225
          %s228 = ssub.s32 512, 512
          %229 = vsyncadd %s223, %s228
          %s230 = smul.addr %s20, 4
          %s231 = smul.addr %s230, 128
          %s232 = scalar_lea.hbm %s0, %s231
          %s233 = sshll.u32 %s226, 4
          %s234 = int_to_ptr.vmem [resolvable:$true] %s233
          %239 = dma.hbm_to_vmem [thread:$0]  %s232, 512, %s234, %s223, 128, 128, 8
        $region36: #{tpu_custom_call.1} parent=31 // pred_fallthru
          _
      $region32: #{tpu_custom_call.1} parent=5 // pred_fallthru
        _
      %p240 = scmp.le.s32.totalorder 1, %s20
      %p241 = scmp.lt.s32.totalorder %s20, 3
      %p242 = pnand %p240, %p241
      %p243 = pneg %p242
      // Predicated region
      $region37: #{tpu_custom_call.1} parent=5 // pred_check
        _
      $region38: #{tpu_custom_call.1} parent=5 // pred_check_branch
        %245 = sbr.rel (%p242) target = $region40
      $region39: #{tpu_custom_call.1} parent=5 // pred_region
        %s246 = ssub.s32 %s20, 1
        %s247 = sand.u32 %s33, 1
        %s248 = scalar_lea.sflag [#allocation4], %s247
        %s249 = sand.u32 %s33, 1
        %s250 = smul.addr %s249, 32
        %s251 = scalar_lea.vmem [#allocation3], %s250
        // Predicated region
        $region41: #{tpu_custom_call.1} parent=39 // pred_check
          %p252 = pneg %p46
        $region42: #{tpu_custom_call.1} parent=39 // pred_check_branch
          %254 = sbr.rel (%p252) target = $region44
        $region43: #{tpu_custom_call.1} parent=39 // pred_region
          %255 = dma.done %s248, 512
        $region44: #{tpu_custom_call.1} parent=39 // pred_fallthru
          _
        // Predicated region
        $region45: #{tpu_custom_call.1} parent=39 // pred_check
          %p256 = pneg %p67
        $region46: #{tpu_custom_call.1} parent=39 // pred_check_branch
          %258 = sbr.rel (%p256) target = $region48
        $region47: #{tpu_custom_call.1} parent=39 // pred_region
          %259 = dma.done [#allocation6], 16
        $region48: #{tpu_custom_call.1} parent=39 // pred_fallthru
          _
        // Predicated region
        $region49: #{tpu_custom_call.1} parent=39 // pred_check
          %p260 = pneg %p88
        $region50: #{tpu_custom_call.1} parent=39 // pred_check_branch
          %262 = sbr.rel (%p260) target = $region52
        $region51: #{tpu_custom_call.1} parent=39 // pred_region
          %263 = dma.done [#allocation9], 16
        $region52: #{tpu_custom_call.1} parent=39 // pred_fallthru
          _
        // Predicated region
        $region53: #{tpu_custom_call.1} parent=39 // pred_check
          %p264 = pneg %p109
        $region54: #{tpu_custom_call.1} parent=39 // pred_check_branch
          %266 = sbr.rel (%p264) target = $region56
        $region55: #{tpu_custom_call.1} parent=39 // pred_region
          %267 = dma.done [#allocation9], 16
        $region56: #{tpu_custom_call.1} parent=39 // pred_fallthru
          _
        // Predicated region
        $region57: #{tpu_custom_call.1} parent=39 // pred_check
          %p268 = pneg %p130
        $region58: #{tpu_custom_call.1} parent=39 // pred_check_branch
          %270 = sbr.rel (%p268) target = $region60
        $region59: #{tpu_custom_call.1} parent=39 // pred_region
          %271 = dma.done [#allocation12], 16
        $region60: #{tpu_custom_call.1} parent=39 // pred_fallthru
          _
        %272 = sfence
        %s273 = sand.u32 %s33, 1
        %s274 = scalar_lea.sflag [#allocation4], %s273
        %s275 = sand.u32 %s33, 1
        %s276 = smul.addr %s275, 32
        %s277 = scalar_lea.vmem [#allocation3], %s276
        %p278 = pneg %p46
        %p279 = pneg %p43
        %p280 = pneg %p67
        %p281 = pneg %p64
        %p282 = pneg %p88
        %p283 = pneg %p85
        %p284 = pneg %p109
        %p285 = pneg %p106
        %p286 = pneg %p130
        %p287 = pneg %p127
        %p288 = pneg %p156
        %p289 = pneg %p153
        %s290 = sand.u32 %s143, 1
        %s291 = scalar_lea.sflag [#allocation5], %s290
        %s292 = sand.u32 %s143, 1
        %s293 = smul.addr %s292, 64
        %s294 = scalar_lea.vmem [#allocation13], %s293
        %v295 = vlaneseq
        %v296 = vshrl.u32 %v295, 7
        %v297 = vadd.s32 %v296, 8
        %v298 = vlaneseq
        %v299 = vand.u32 %v298, 127
        %v300 = vmul.u32 %v299, 2
        %vm301 = vcmp.eq.s32.totalorder %v296, %v300
        %vm302 = vcmp.eq.s32.totalorder %v297, %v300
        %v303 = vsel %vm301, 1, 0
        %v304 = vsel %vm302, 1, 0
        %v305 = vcvt.s32.f32 %v303
        %v306 = vcvt.s32.f32 %v304
        loop: start=0, step=1, limit=4
        $region61: #{tpu_custom_call.1} parent=39 // loop_pre_header
          _
        $region62: #{tpu_custom_call.1} parent=39 // loop_header
          %s308 = sphi 0, %s312
          %p309 = scmp.ge.s32.totalorder %s308, 4
          %v313 = vphi 0.0, %v318
          %v314 = vphi 0.0, %v320
        $region63: #{tpu_custom_call.1} parent=39 // loop_header_branch
          %311 = sbr.rel (%p309) target = $region67
        $region64: #{tpu_custom_call.1} parent=39 // loop_body
          %s315 = smul.u32 %s308, 8
          %s316 = scalar_lea.vmem %s251, %s315 [#allocation3]
          %v317 = vld [vmem:[%s316] sm:$0xff]
          %v318 = vadd.f32 %v313, %v317
          %v319 = vmul.f32 %v317, %v317
          %v320 = vadd.f32 %v314, %v319
        $region65: #{tpu_custom_call.1} parent=39 // loop_footer
          %s312 = sadd.s32 1, %s308
        $region66: #{tpu_custom_call.1} parent=39 // loop_footer_branch
          %307 = sbr.rel target = $region62
        $region67: #{tpu_custom_call.1} parent=39 // loop_exit
          _
        %v321 = vmul.f32 %v313, 0.25
        %v322 = vmul.f32 %v314, 0.25
        %v323 = vmul.f32 %v321, %v321
        %v324 = vsub.f32 %v322, %v323
        %v325 = vadd.f32 %v324, 1e-06
        %v326 = vrsqrt.pop %v325
        loop: start=0, step=1, limit=4
        $region68: #{tpu_custom_call.1} parent=39 // loop_pre_header
          _
        $region69: #{tpu_custom_call.1} parent=39 // loop_header
          %s328 = sphi 0, %s332
          %p329 = scmp.ge.s32.totalorder %s328, 4
        $region70: #{tpu_custom_call.1} parent=39 // loop_header_branch
          %331 = sbr.rel (%p329) target = $region74
        $region71: #{tpu_custom_call.1} parent=39 // loop_body
          %s333 = smul.u32 %s328, 8
          %s334 = scalar_lea.vmem %s251, %s333 [#allocation3]
          %v335 = vld [vmem:[%s334] sm:$0xff]
          %v336 = vsub.f32 %v335, %v321
          %s337 = sld [smem:[#allocation7 + %s328]]
          %v338 = vstv %s337
          %v339 = vmul.f32 %v326, %v338
          %v340 = vmul.f32 %v336, %v339
          %s341 = sld [smem:[#allocation8 + %s328]]
          %v342 = vstv %s341
          %v343 = vadd.f32 %v340, %v342
          %v344 = vmul.f32 %v343, 0.5
          %v345 = vmul.f32 %v343, 0.044715
          %v346 = vmul.f32 %v345, %v343
          %v347 = vmul.f32 %v346, %v343
          %v348 = vadd.f32 %v343, %v347
          %v349 = vmul.f32 %v348, 0.7978846
          %v350 = vtanh.pop %v349
          %v351 = vadd.f32 %v350, 1.0
          %v352 = vmul.f32 %v344, %v351
          %354 = vrot.lane.b32.xlu0 %v352, 1
          %v355 = vpop.permute.xlu0 %354
          %vm357 = vcmask 7168
          %v358 = vsel %vm357, 0.0, %v355
          %359 = vrot.lane.b32.xlu0 %v352, 127
          %v360 = vpop.permute.xlu0 %359
          %vm362 = vcmask 121856
          %v363 = vsel %vm362, %v360, 0.0
          %364 = vrot.lane.b32.xlu0 %v352, 113
          %v365 = vpop.permute.xlu0 %364
          %v367 = vsel %vm357, 0.0, %v365
          %368 = vrot.lane.b32.xlu0 %v352, 111
          %v369 = vpop.permute.xlu0 %368
          %v371 = vsel %vm362, %v369, 0.0
          %s372 = smul.u32 %s328, 2
          %s373 = smul.u32 %s328, 18
          %s374 = sld [smem:[#allocation10 + %s373]]
          %s375 = sadd.s32 %s373, 1
          %s376 = sld [smem:[#allocation10 + %s375]]
          %s377 = sadd.s32 %s373, 2
          %s378 = sld [smem:[#allocation10 + %s377]]
          %s379 = sadd.s32 %s373, 3
          %s380 = sld [smem:[#allocation10 + %s379]]
          %s381 = sadd.s32 %s373, 4
          %s382 = sld [smem:[#allocation10 + %s381]]
          %s383 = sadd.s32 %s373, 5
          %s384 = sld [smem:[#allocation10 + %s383]]
          %s385 = sadd.s32 %s373, 6
          %s386 = sld [smem:[#allocation10 + %s385]]
          %s387 = sadd.s32 %s373, 7
          %s388 = sld [smem:[#allocation10 + %s387]]
          %s389 = sadd.s32 %s373, 8
          %s390 = sld [smem:[#allocation10 + %s389]]
          %v391 = vstv %s380
          %v392 = vmul.f32 %v391, %v358
          %v393 = vstv %s382
          %v394 = vmul.f32 %v393, %v352
          %v395 = vadd.f32 %v392, %v394
          %v396 = vstv %s384
          %v397 = vmul.f32 %v396, %v363
          %v398 = vadd.f32 %v395, %v397
          %v399 = vstv %s386
          %v400 = vmul.f32 %v399, %v367
          %v401 = vadd.f32 %v398, %v400
          %v402 = vstv %s388
          %v403 = vmul.f32 %v402, %v352
          %405 = vrot.lane.b32.xlu0 %v403, 112
          %v406 = vpop.permute.xlu0 %405
          %v408 = vadd.f32 %v401, %v406
          %v409 = vstv %s390
          %v410 = vmul.f32 %v409, %v371
          %v411 = vadd.f32 %v408, %v410
          %s412 = sld [smem:[#allocation11 + %s372]]
          %v413 = vstv %s412
          %v414 = vadd.f32 %v411, %v413
          %v415 = vstv %s374
          %v416 = vmul.f32 %v415, %v367
          %v417 = vstv %s376
          %v418 = vmul.f32 %v417, %v352
          %420 = vrot.lane.b32.xlu0 %v418, 112
          %v421 = vpop.permute.xlu0 %420
          %v423 = vadd.f32 %v416, %v421
          %v424 = vstv %s378
          %v425 = vmul.f32 %v424, %v371
          %v426 = vadd.f32 %v423, %v425
          %v428 = vrot.slane %v426, 7
          %vm430 = vcmask 1040384
          %v431 = vsel %vm430, 0.0, %v428
          %v432 = vadd.f32 %v414, %v431
          %s433 = smul.u32 %s372, 8
          %s434 = scalar_lea.vmem [#allocation2], %s433
          %vm435 = vcmask 130048
          %436 = vst.msk [vmem:[%s434] sm:$0xff] %vm435, %v432
          %s437 = sadd.s32 %s372, 1
          %s438 = smul.u32 %s437, 9
          %s439 = sld [smem:[#allocation10 + %s438]]
          %s440 = sadd.s32 %s438, 1
          %s441 = sld [smem:[#allocation10 + %s440]]
          %s442 = sadd.s32 %s438, 2
          %s443 = sld [smem:[#allocation10 + %s442]]
          %s444 = sadd.s32 %s438, 3
          %s445 = sld [smem:[#allocation10 + %s444]]
          %s446 = sadd.s32 %s438, 4
          %s447 = sld [smem:[#allocation10 + %s446]]
          %s448 = sadd.s32 %s438, 5
          %s449 = sld [smem:[#allocation10 + %s448]]
          %s450 = sadd.s32 %s438, 6
          %s451 = sld [smem:[#allocation10 + %s450]]
          %s452 = sadd.s32 %s438, 7
          %s453 = sld [smem:[#allocation10 + %s452]]
          %s454 = sadd.s32 %s438, 8
          %s455 = sld [smem:[#allocation10 + %s454]]
          %v456 = vstv %s445
          %v457 = vmul.f32 %v456, %v358
          %v458 = vstv %s447
          %v459 = vmul.f32 %v458, %v352
          %v460 = vadd.f32 %v457, %v459
          %v461 = vstv %s449
          %v462 = vmul.f32 %v461, %v363
          %v463 = vadd.f32 %v460, %v462
          %v464 = vstv %s451
          %v465 = vmul.f32 %v464, %v367
          %v466 = vadd.f32 %v463, %v465
          %v467 = vstv %s453
          %v468 = vmul.f32 %v467, %v352
          %470 = vrot.lane.b32.xlu0 %v468, 112
          %v471 = vpop.permute.xlu0 %470
          %v473 = vadd.f32 %v466, %v471
          %v474 = vstv %s455
          %v475 = vmul.f32 %v474, %v371
          %v476 = vadd.f32 %v473, %v475
          %s477 = sld [smem:[#allocation11 + %s437]]
          %v478 = vstv %s477
          %v479 = vadd.f32 %v476, %v478
          %v480 = vstv %s439
          %v481 = vmul.f32 %v480, %v367
          %v482 = vstv %s441
          %v483 = vmul.f32 %v482, %v352
          %485 = vrot.lane.b32.xlu0 %v483, 112
          %v486 = vpop.permute.xlu0 %485
          %v488 = vadd.f32 %v481, %v486
          %v489 = vstv %s443
          %v490 = vmul.f32 %v489, %v371
          %v491 = vadd.f32 %v488, %v490
          %v493 = vrot.slane %v491, 7
          %v495 = vsel %vm430, 0.0, %v493
          %v496 = vadd.f32 %v479, %v495
          %s497 = smul.u32 %s437, 8
          %s498 = scalar_lea.vmem [#allocation2], %s497
          %499 = vst.msk [vmem:[%s498] sm:$0xff] %vm435, %v496
        $region72: #{tpu_custom_call.1} parent=39 // loop_footer
          %s332 = sadd.s32 1, %s328
        $region73: #{tpu_custom_call.1} parent=39 // loop_footer_branch
          %327 = sbr.rel target = $region69
        $region74: #{tpu_custom_call.1} parent=39 // loop_exit
          _
        %v500 = vld [vmem:[#allocation2] sm:$0xff]
        %v501 = vld [vmem:[#allocation2 + $0x8] sm:$0xff]
        %v502 = vld [vmem:[#allocation2 + $0x10] sm:$0xff]
        %v503 = vld [vmem:[#allocation2 + $0x18] sm:$0xff]
        %v504 = vld [vmem:[#allocation2 + $0x20] sm:$0xff]
        %v505 = vld [vmem:[#allocation2 + $0x28] sm:$0xff]
        %v506 = vld [vmem:[#allocation2 + $0x30] sm:$0xff]
        %v507 = vld [vmem:[#allocation2 + $0x38] sm:$0xff]
        %vm508 = vcmask 130048
        %v510 = vsel %vm508, %v500, 0
        %v513 = vsel %vm508, %v501, 0
        %v516 = vsel %vm508, %v502, 0
        %v519 = vsel %vm508, %v503, 0
        %v522 = vsel %vm508, %v504, 0
        %v525 = vsel %vm508, %v505, 0
        %v528 = vsel %vm508, %v506, 0
        %v531 = vsel %vm508, %v507, 0
        %533 = vmatprep.subr.mxu0 0.0
        %v534 = vand.u32 %v305, 4294901760
        %535 = vmatpush1.msra.mxu0 %v534
        %536 = vmatprep.subr.mxu0 0.0
        %v537 = vand.u32 %v306, 4294901760
        %538 = vmatpush1.msra.mxu0 %v537
        %539 = vmatprep.subr.mxu0 0.0
        %540 = vmatpush1.msra.mxu0 0.0
        %541 = vmatprep.subr.mxu0 0.0
        %542 = vmatpush1.msra.mxu0 0.0
        %543 = vmatprep.subr.mxu0 0.0
        %544 = vmatpush1.msra.mxu0 0.0
        %545 = vmatprep.subr.mxu0 0.0
        %546 = vmatpush1.msra.mxu0 0.0
        %547 = vmatprep.subr.mxu0 0.0
        %548 = vmatpush1.msra.mxu0 0.0
        %549 = vmatprep.subr.mxu0 0.0
        %550 = vmatpush1.msra.mxu0 0.0
        %551 = vmatprep.subr.mxu0 0.0
        %552 = vmatpush1.msra.mxu0 0.0
        %553 = vmatprep.subr.mxu0 0.0
        %554 = vmatpush1.msra.mxu0 0.0
        %555 = vmatprep.subr.mxu0 0.0
        %556 = vmatpush1.msra.mxu0 0.0
        %557 = vmatprep.subr.mxu0 0.0
        %558 = vmatpush1.msra.mxu0 0.0
        %559 = vmatprep.subr.mxu0 0.0
        %560 = vmatpush1.msra.mxu0 0.0
        %561 = vmatprep.subr.mxu0 0.0
        %562 = vmatpush1.msra.mxu0 0.0
        %563 = vmatprep.subr.mxu0 0.0
        %564 = vmatpush1.msra.mxu0 0.0
        %565 = vmatprep.subr.mxu0 0.0
        %566 = vmatpush1.msra.mxu0 0.0
        %567 = vmatprep.subr.mxu0 0.0
        %568 = vmatpush1.msra.mxu0 0.0
        %569 = vmatprep.subr.mxu0 0.0
        %570 = vmatpush1.msra.mxu0 0.0
        %571 = vmatprep.subr.mxu0 0.0
        %572 = vmatpush1.msra.mxu0 0.0
        %573 = vmatprep.subr.mxu0 0.0
        %574 = vmatpush1.msra.mxu0 0.0
        %575 = vmatprep.subr.mxu0 0.0
        %576 = vmatpush1.msra.mxu0 0.0
        %577 = vmatprep.subr.mxu0 0.0
        %578 = vmatpush1.msra.mxu0 0.0
        %579 = vmatprep.subr.mxu0 0.0
        %580 = vmatpush1.msra.mxu0 0.0
        %581 = vmatprep.subr.mxu0 0.0
        %582 = vmatpush1.msra.mxu0 0.0
        %583 = vmatprep.subr.mxu0 0.0
        %584 = vmatpush1.msra.mxu0 0.0
        %585 = vmatprep.subr.mxu0 0.0
        %586 = vmatpush1.msra.mxu0 0.0
        %587 = vmatprep.subr.mxu0 0.0
        %588 = vmatpush1.msra.mxu0 0.0
        %589 = vmatprep.subr.mxu0 0.0
        %590 = vmatpush1.msra.mxu0 0.0
        %591 = vmatprep.subr.mxu0 0.0
        %592 = vmatpush1.msra.mxu0 0.0
        %593 = vmatprep.subr.mxu0 0.0
        %594 = vmatpush1.msra.mxu0 0.0
        %595 = vmatprep.subr.mxu0 0.0
        %596 = vmatpush1.msra.mxu0 0.0
        %597 = vmatprep.subr.mxu0 0.0
        %598 = vmatpush1.msra.mxu0 0.0
        %599 = vmatprep.mubr.f32.mxu0 0.0
        %v600 = vand.u32 %v510, 4294901760
        %v601 = vsub.f32 %v510, %v600
        %v602 = vand.u32 %v601, 4294901760
        %v603 = vsub.f32 %v601, %v602
        %v604 = vand.u32 %v603, 4294901760
        %605 = vmatmul.mubr.f32.gmra.mrb[0].mxu0 %v604
        %v606 = vpop.f32.mrb[0].mxu0
        %v607 = vadd.f32 0.0, %v606
        %v608 = vpop.f32.mrb[0].mxu0
        %609 = vmatprep.mubr.f32.mxu0 0.0
        %v610 = vand.u32 %v513, 4294901760
        %v611 = vsub.f32 %v513, %v610
        %v612 = vand.u32 %v611, 4294901760
        %v613 = vsub.f32 %v611, %v612
        %v614 = vand.u32 %v613, 4294901760
        %615 = vmatmul.mubr.f32.gmra.mrb[0].mxu0 %v614
        %v616 = vpop.f32.mrb[0].mxu0
        %v617 = vadd.f32 0.0, %v616
        %v618 = vpop.f32.mrb[0].mxu0
        %619 = vmatprep.mubr.f32.mxu0 0.0
        %v620 = vand.u32 %v516, 4294901760
        %v621 = vsub.f32 %v516, %v620
        %v622 = vand.u32 %v621, 4294901760
        %v623 = vsub.f32 %v621, %v622
        %v624 = vand.u32 %v623, 4294901760
        %625 = vmatmul.mubr.f32.gmra.mrb[0].mxu0 %v624
        %v626 = vpop.f32.mrb[0].mxu0
        %v627 = vadd.f32 0.0, %v626
        %v628 = vpop.f32.mrb[0].mxu0
        %629 = vmatprep.mubr.f32.mxu0 0.0
        %v630 = vand.u32 %v519, 4294901760
        %v631 = vsub.f32 %v519, %v630
        %v632 = vand.u32 %v631, 4294901760
        %v633 = vsub.f32 %v631, %v632
        %v634 = vand.u32 %v633, 4294901760
        %635 = vmatmul.mubr.f32.gmra.mrb[0].mxu0 %v634
        %v636 = vpop.f32.mrb[0].mxu0
        %v637 = vadd.f32 0.0, %v636
        %v638 = vpop.f32.mrb[0].mxu0
        %639 = vmatprep.mubr.f32.mxu0 0.0
        %v640 = vand.u32 %v522, 4294901760
        %v641 = vsub.f32 %v522, %v640
        %v642 = vand.u32 %v641, 4294901760
        %v643 = vsub.f32 %v641, %v642
        %v644 = vand.u32 %v643, 4294901760
        %645 = vmatmul.mubr.f32.gmra.mrb[0].mxu0 %v644
        %v646 = vpop.f32.mrb[0].mxu0
        %v647 = vadd.f32 0.0, %v646
        %v648 = vpop.f32.mrb[0].mxu0
        %649 = vmatprep.mubr.f32.mxu0 0.0
        %v650 = vand.u32 %v525, 4294901760
        %v651 = vsub.f32 %v525, %v650
        %v652 = vand.u32 %v651, 4294901760
        %v653 = vsub.f32 %v651, %v652
        %v654 = vand.u32 %v653, 4294901760
        %655 = vmatmul.mubr.f32.gmra.mrb[0].mxu0 %v654
        %v656 = vpop.f32.mrb[0].mxu0
        %v657 = vadd.f32 0.0, %v656
        %v658 = vpop.f32.mrb[0].mxu0
        %659 = vmatprep.mubr.f32.mxu0 0.0
        %v660 = vand.u32 %v528, 4294901760
        %v661 = vsub.f32 %v528, %v660
        %v662 = vand.u32 %v661, 4294901760
        %v663 = vsub.f32 %v661, %v662
        %v664 = vand.u32 %v663, 4294901760
        %665 = vmatmul.mubr.f32.gmra.mrb[0].mxu0 %v664
        %v666 = vpop.f32.mrb[0].mxu0
        %v667 = vadd.f32 0.0, %v666
        %v668 = vpop.f32.mrb[0].mxu0
        %669 = vmatprep.mubr.f32.mxu0 0.0
        %v670 = vand.u32 %v531, 4294901760
        %v671 = vsub.f32 %v531, %v670
        %v672 = vand.u32 %v671, 4294901760
        %v673 = vsub.f32 %v671, %v672
        %v674 = vand.u32 %v673, 4294901760
        %675 = vmatmul.mubr.f32.gmra.mrb[0].mxu0 %v674
        %v676 = vpop.f32.mrb[0].mxu0
        %v677 = vadd.f32 0.0, %v676
        %v678 = vpop.f32.mrb[0].mxu0
        %679 = vdwg.mxu0
        %680 = vmatprep.subr.mxu0 0.0
        %v681 = vand.u32 %v305, 4294901760
        %v682 = vsub.f32 %v305, %v681
        %v683 = vand.u32 %v682, 4294901760
        %v684 = vsub.f32 %v682, %v683
        %v685 = vand.u32 %v684, 4294901760
        %686 = vmatpush1.msra.mxu0 %v685
        %687 = vmatprep.subr.mxu0 0.0
        %v688 = vand.u32 %v306, 4294901760
        %v689 = vsub.f32 %v306, %v688
        %v690 = vand.u32 %v689, 4294901760
        %v691 = vsub.f32 %v689, %v690
        %v692 = vand.u32 %v691, 4294901760
        %693 = vmatpush1.msra.mxu0 %v692
        %694 = vmatprep.subr.mxu0 0.0
        %695 = vmatpush1.msra.mxu0 0.0
        %696 = vmatprep.subr.mxu0 0.0
        %697 = vmatpush1.msra.mxu0 0.0
        %698 = vmatprep.subr.mxu0 0.0
        %699 = vmatpush1.msra.mxu0 0.0
        %700 = vmatprep.subr.mxu0 0.0
        %701 = vmatpush1.msra.mxu0 0.0
        %702 = vmatprep.subr.mxu0 0.0
        %703 = vmatpush1.msra.mxu0 0.0
        %704 = vmatprep.subr.mxu0 0.0
        %705 = vmatpush1.msra.mxu0 0.0
        %706 = vmatprep.subr.mxu0 0.0
        %707 = vmatpush1.msra.mxu0 0.0
        %708 = vmatprep.subr.mxu0 0.0
        %709 = vmatpush1.msra.mxu0 0.0
        %710 = vmatprep.subr.mxu0 0.0
        %711 = vmatpush1.msra.mxu0 0.0
        %712 = vmatprep.subr.mxu0 0.0
        %713 = vmatpush1.msra.mxu0 0.0
        %714 = vmatprep.subr.mxu0 0.0
        %715 = vmatpush1.msra.mxu0 0.0
        %716 = vmatprep.subr.mxu0 0.0
        %717 = vmatpush1.msra.mxu0 0.0
        %718 = vmatprep.subr.mxu0 0.0
        %719 = vmatpush1.msra.mxu0 0.0
        %720 = vmatprep.subr.mxu0 0.0
        %721 = vmatpush1.msra.mxu0 0.0
        %722 = vmatprep.subr.mxu0 0.0
        %723 = vmatpush1.msra.mxu0 0.0
        %724 = vmatprep.subr.mxu0 0.0
        %725 = vmatpush1.msra.mxu0 0.0
        %726 = vmatprep.subr.mxu0 0.0
        %727 = vmatpush1.msra.mxu0 0.0
        %728 = vmatprep.subr.mxu0 0.0
        %729 = vmatpush1.msra.mxu0 0.0
        %730 = vmatprep.subr.mxu0 0.0
        %731 = vmatpush1.msra.mxu0 0.0
        %732 = vmatprep.subr.mxu0 0.0
        %733 = vmatpush1.msra.mxu0 0.0
        %734 = vmatprep.subr.mxu0 0.0
        %735 = vmatpush1.msra.mxu0 0.0
        %736 = vmatprep.subr.mxu0 0.0
        %737 = vmatpush1.msra.mxu0 0.0
        %738 = vmatprep.subr.mxu0 0.0
        %739 = vmatpush1.msra.mxu0 0.0
        %740 = vmatprep.subr.mxu0 0.0
        %741 = vmatpush1.msra.mxu0 0.0
        %742 = vmatprep.subr.mxu0 0.0
        %743 = vmatpush1.msra.mxu0 0.0
        %744 = vmatprep.subr.mxu0 0.0
        %745 = vmatpush1.msra.mxu0 0.0
        %746 = vmatprep.subr.mxu0 0.0
        %747 = vmatpush1.msra.mxu0 0.0
        %748 = vmatprep.subr.mxu0 0.0
        %749 = vmatpush1.msra.mxu0 0.0
        %750 = vmatprep.subr.mxu0 0.0
        %751 = vmatpush1.msra.mxu0 0.0
        %752 = vmatprep.subr.mxu0 0.0
        %753 = vmatpush1.msra.mxu0 0.0
        %754 = vmatprep.mubr.f32.mxu0 0.0
        %v755 = vand.u32 %v510, 4294901760
        %756 = vmatmul.mubr.f32.gmra.mrb[0].mxu0 %v755
        %v757 = vpop.f32.mrb[0].mxu0
        %v758 = vadd.f32 %v607, %v757
        %v759 = vpop.f32.mrb[0].mxu0
        %760 = vmatprep.mubr.f32.mxu0 0.0
        %v761 = vand.u32 %v513, 4294901760
        %762 = vmatmul.mubr.f32.gmra.mrb[0].mxu0 %v761
        %v763 = vpop.f32.mrb[0].mxu0
        %v764 = vadd.f32 %v617, %v763
        %v765 = vpop.f32.mrb[0].mxu0
        %766 = vmatprep.mubr.f32.mxu0 0.0
        %v767 = vand.u32 %v516, 4294901760
        %768 = vmatmul.mubr.f32.gmra.mrb[0].mxu0 %v767
        %v769 = vpop.f32.mrb[0].mxu0
        %v770 = vadd.f32 %v627, %v769
        %v771 = vpop.f32.mrb[0].mxu0
        %772 = vmatprep.mubr.f32.mxu0 0.0
        %v773 = vand.u32 %v519, 4294901760
        %774 = vmatmul.mubr.f32.gmra.mrb[0].mxu0 %v773
        %v775 = vpop.f32.mrb[0].mxu0
        %v776 = vadd.f32 %v637, %v775
        %v777 = vpop.f32.mrb[0].mxu0
        %778 = vmatprep.mubr.f32.mxu0 0.0
        %v779 = vand.u32 %v522, 4294901760
        %780 = vmatmul.mubr.f32.gmra.mrb[0].mxu0 %v779
        %v781 = vpop.f32.mrb[0].mxu0
        %v782 = vadd.f32 %v647, %v781
        %v783 = vpop.f32.mrb[0].mxu0
        %784 = vmatprep.mubr.f32.mxu0 0.0
        %v785 = vand.u32 %v525, 4294901760
        %786 = vmatmul.mubr.f32.gmra.mrb[0].mxu0 %v785
        %v787 = vpop.f32.mrb[0].mxu0
        %v788 = vadd.f32 %v657, %v787
        %v789 = vpop.f32.mrb[0].mxu0
        %790 = vmatprep.mubr.f32.mxu0 0.0
        %v791 = vand.u32 %v528, 4294901760
        %792 = vmatmul.mubr.f32.gmra.mrb[0].mxu0 %v791
        %v793 = vpop.f32.mrb[0].mxu0
        %v794 = vadd.f32 %v667, %v793
        %v795 = vpop.f32.mrb[0].mxu0
        %796 = vmatprep.mubr.f32.mxu0 0.0
        %v797 = vand.u32 %v531, 4294901760
        %798 = vmatmul.mubr.f32.gmra.mrb[0].mxu0 %v797
        %v799 = vpop.f32.mrb[0].mxu0
        %v800 = vadd.f32 %v677, %v799
        %v801 = vpop.f32.mrb[0].mxu0
        %802 = vdwg.mxu0
        %803 = vmatprep.subr.mxu0 0.0
        %v804 = vand.u32 %v305, 4294901760
        %v805 = vsub.f32 %v305, %v804
        %806 = vmatpush1.msra.mxu0 %v805
        %807 = vmatprep.subr.mxu0 0.0
        %v808 = vand.u32 %v306, 4294901760
        %v809 = vsub.f32 %v306, %v808
        %810 = vmatpush1.msra.mxu0 %v809
        %811 = vmatprep.subr.mxu0 0.0
        %812 = vmatpush1.msra.mxu0 0.0
        %813 = vmatprep.subr.mxu0 0.0
        %814 = vmatpush1.msra.mxu0 0.0
        %815 = vmatprep.subr.mxu0 0.0
        %816 = vmatpush1.msra.mxu0 0.0
        %817 = vmatprep.subr.mxu0 0.0
        %818 = vmatpush1.msra.mxu0 0.0
        %819 = vmatprep.subr.mxu0 0.0
        %820 = vmatpush1.msra.mxu0 0.0
        %821 = vmatprep.subr.mxu0 0.0
        %822 = vmatpush1.msra.mxu0 0.0
        %823 = vmatprep.subr.mxu0 0.0
        %824 = vmatpush1.msra.mxu0 0.0
        %825 = vmatprep.subr.mxu0 0.0
        %826 = vmatpush1.msra.mxu0 0.0
        %827 = vmatprep.subr.mxu0 0.0
        %828 = vmatpush1.msra.mxu0 0.0
        %829 = vmatprep.subr.mxu0 0.0
        %830 = vmatpush1.msra.mxu0 0.0
        %831 = vmatprep.subr.mxu0 0.0
        %832 = vmatpush1.msra.mxu0 0.0
        %833 = vmatprep.subr.mxu0 0.0
        %834 = vmatpush1.msra.mxu0 0.0
        %835 = vmatprep.subr.mxu0 0.0
        %836 = vmatpush1.msra.mxu0 0.0
        %837 = vmatprep.subr.mxu0 0.0
        %838 = vmatpush1.msra.mxu0 0.0
        %839 = vmatprep.subr.mxu0 0.0
        %840 = vmatpush1.msra.mxu0 0.0
        %841 = vmatprep.subr.mxu0 0.0
        %842 = vmatpush1.msra.mxu0 0.0
        %843 = vmatprep.subr.mxu0 0.0
        %844 = vmatpush1.msra.mxu0 0.0
        %845 = vmatprep.subr.mxu0 0.0
        %846 = vmatpush1.msra.mxu0 0.0
        %847 = vmatprep.subr.mxu0 0.0
        %848 = vmatpush1.msra.mxu0 0.0
        %849 = vmatprep.subr.mxu0 0.0
        %850 = vmatpush1.msra.mxu0 0.0
        %851 = vmatprep.subr.mxu0 0.0
        %852 = vmatpush1.msra.mxu0 0.0
        %853 = vmatprep.subr.mxu0 0.0
        %854 = vmatpush1.msra.mxu0 0.0
        %855 = vmatprep.subr.mxu0 0.0
        %856 = vmatpush1.msra.mxu0 0.0
        %857 = vmatprep.subr.mxu0 0.0
        %858 = vmatpush1.msra.mxu0 0.0
        %859 = vmatprep.subr.mxu0 0.0
        %860 = vmatpush1.msra.mxu0 0.0
        %861 = vmatprep.subr.mxu0 0.0
        %862 = vmatpush1.msra.mxu0 0.0
        %863 = vmatprep.subr.mxu0 0.0
        %864 = vmatpush1.msra.mxu0 0.0
        %865 = vmatprep.subr.mxu0 0.0
        %866 = vmatpush1.msra.mxu0 0.0
        %867 = vmatprep.subr.mxu0 0.0
        %868 = vmatpush1.msra.mxu0 0.0
        %869 = vmatprep.subr.mxu0 0.0
        %870 = vmatpush1.msra.mxu0 0.0
        %871 = vmatprep.mubr.f32.mxu0 0.0
        %v872 = vand.u32 %v510, 4294901760
        %v873 = vsub.f32 %v510, %v872
        %874 = vmatmul.mubr.f32.gmra.mrb[0].mxu0 %v873
        %v875 = vpop.f32.mrb[0].mxu0
        %v876 = vadd.f32 %v758, %v875
        %v877 = vpop.f32.mrb[0].mxu0
        %878 = vmatprep.mubr.f32.mxu0 0.0
        %v879 = vand.u32 %v513, 4294901760
        %v880 = vsub.f32 %v513, %v879
        %881 = vmatmul.mubr.f32.gmra.mrb[0].mxu0 %v880
        %v882 = vpop.f32.mrb[0].mxu0
        %v883 = vadd.f32 %v764, %v882
        %v884 = vpop.f32.mrb[0].mxu0
        %885 = vmatprep.mubr.f32.mxu0 0.0
        %v886 = vand.u32 %v516, 4294901760
        %v887 = vsub.f32 %v516, %v886
        %888 = vmatmul.mubr.f32.gmra.mrb[0].mxu0 %v887
        %v889 = vpop.f32.mrb[0].mxu0
        %v890 = vadd.f32 %v770, %v889
        %v891 = vpop.f32.mrb[0].mxu0
        %892 = vmatprep.mubr.f32.mxu0 0.0
        %v893 = vand.u32 %v519, 4294901760
        %v894 = vsub.f32 %v519, %v893
        %895 = vmatmul.mubr.f32.gmra.mrb[0].mxu0 %v894
        %v896 = vpop.f32.mrb[0].mxu0
        %v897 = vadd.f32 %v776, %v896
        %v898 = vpop.f32.mrb[0].mxu0
        %899 = vmatprep.mubr.f32.mxu0 0.0
        %v900 = vand.u32 %v522, 4294901760
        %v901 = vsub.f32 %v522, %v900
        %902 = vmatmul.mubr.f32.gmra.mrb[0].mxu0 %v901
        %v903 = vpop.f32.mrb[0].mxu0
        %v904 = vadd.f32 %v782, %v903
        %v905 = vpop.f32.mrb[0].mxu0
        %906 = vmatprep.mubr.f32.mxu0 0.0
        %v907 = vand.u32 %v525, 4294901760
        %v908 = vsub.f32 %v525, %v907
        %909 = vmatmul.mubr.f32.gmra.mrb[0].mxu0 %v908
        %v910 = vpop.f32.mrb[0].mxu0
        %v911 = vadd.f32 %v788, %v910
        %v912 = vpop.f32.mrb[0].mxu0
        %913 = vmatprep.mubr.f32.mxu0 0.0
        %v914 = vand.u32 %v528, 4294901760
        %v915 = vsub.f32 %v528, %v914
        %916 = vmatmul.mubr.f32.gmra.mrb[0].mxu0 %v915
        %v917 = vpop.f32.mrb[0].mxu0
        %v918 = vadd.f32 %v794, %v917
        %v919 = vpop.f32.mrb[0].mxu0
        %920 = vmatprep.mubr.f32.mxu0 0.0
        %v921 = vand.u32 %v531, 4294901760
        %v922 = vsub.f32 %v531, %v921
        %923 = vmatmul.mubr.f32.gmra.mrb[0].mxu0 %v922
        %v924 = vpop.f32.mrb[0].mxu0
        %v925 = vadd.f32 %v800, %v924
        %v926 = vpop.f32.mrb[0].mxu0
        %927 = vdwg.mxu0
        %928 = vmatprep.subr.mxu0 0.0
        %v929 = vand.u32 %v305, 4294901760
        %930 = vmatpush1.msra.mxu0 %v929
        %931 = vmatprep.subr.mxu0 0.0
        %v932 = vand.u32 %v306, 4294901760
        %933 = vmatpush1.msra.mxu0 %v932
        %934 = vmatprep.subr.mxu0 0.0
        %935 = vmatpush1.msra.mxu0 0.0
        %936 = vmatprep.subr.mxu0 0.0
        %937 = vmatpush1.msra.mxu0 0.0
        %938 = vmatprep.subr.mxu0 0.0
        %939 = vmatpush1.msra.mxu0 0.0
        %940 = vmatprep.subr.mxu0 0.0
        %941 = vmatpush1.msra.mxu0 0.0
        %942 = vmatprep.subr.mxu0 0.0
        %943 = vmatpush1.msra.mxu0 0.0
        %944 = vmatprep.subr.mxu0 0.0
        %945 = vmatpush1.msra.mxu0 0.0
        %946 = vmatprep.subr.mxu0 0.0
        %947 = vmatpush1.msra.mxu0 0.0
        %948 = vmatprep.subr.mxu0 0.0
        %949 = vmatpush1.msra.mxu0 0.0
        %950 = vmatprep.subr.mxu0 0.0
        %951 = vmatpush1.msra.mxu0 0.0
        %952 = vmatprep.subr.mxu0 0.0
        %953 = vmatpush1.msra.mxu0 0.0
        %954 = vmatprep.subr.mxu0 0.0
        %955 = vmatpush1.msra.mxu0 0.0
        %956 = vmatprep.subr.mxu0 0.0
        %957 = vmatpush1.msra.mxu0 0.0
        %958 = vmatprep.subr.mxu0 0.0
        %959 = vmatpush1.msra.mxu0 0.0
        %960 = vmatprep.subr.mxu0 0.0
        %961 = vmatpush1.msra.mxu0 0.0
        %962 = vmatprep.subr.mxu0 0.0
        %963 = vmatpush1.msra.mxu0 0.0
        %964 = vmatprep.subr.mxu0 0.0
        %965 = vmatpush1.msra.mxu0 0.0
        %966 = vmatprep.subr.mxu0 0.0
        %967 = vmatpush1.msra.mxu0 0.0
        %968 = vmatprep.subr.mxu0 0.0
        %969 = vmatpush1.msra.mxu0 0.0
        %970 = vmatprep.subr.mxu0 0.0
        %971 = vmatpush1.msra.mxu0 0.0
        %972 = vmatprep.subr.mxu0 0.0
        %973 = vmatpush1.msra.mxu0 0.0
        %974 = vmatprep.subr.mxu0 0.0
        %975 = vmatpush1.msra.mxu0 0.0
        %976 = vmatprep.subr.mxu0 0.0
        %977 = vmatpush1.msra.mxu0 0.0
        %978 = vmatprep.subr.mxu0 0.0
        %979 = vmatpush1.msra.mxu0 0.0
        %980 = vmatprep.subr.mxu0 0.0
        %981 = vmatpush1.msra.mxu0 0.0
        %982 = vmatprep.subr.mxu0 0.0
        %983 = vmatpush1.msra.mxu0 0.0
        %984 = vmatprep.subr.mxu0 0.0
        %985 = vmatpush1.msra.mxu0 0.0
        %986 = vmatprep.subr.mxu0 0.0
        %987 = vmatpush1.msra.mxu0 0.0
        %988 = vmatprep.subr.mxu0 0.0
        %989 = vmatpush1.msra.mxu0 0.0
        %990 = vmatprep.subr.mxu0 0.0
        %991 = vmatpush1.msra.mxu0 0.0
        %992 = vmatprep.subr.mxu0 0.0
        %993 = vmatpush1.msra.mxu0 0.0
        %994 = vmatprep.mubr.f32.mxu0 0.0
        %v995 = vand.u32 %v510, 4294901760
        %v996 = vsub.f32 %v510, %v995
        %v997 = vand.u32 %v996, 4294901760
        %998 = vmatmul.mubr.f32.gmra.mrb[0].mxu0 %v997
        %v999 = vpop.f32.mrb[0].mxu0
        %v1000 = vadd.f32 %v876, %v999
        %v1001 = vpop.f32.mrb[0].mxu0
        %1002 = vmatprep.mubr.f32.mxu0 0.0
        %v1003 = vand.u32 %v513, 4294901760
        %v1004 = vsub.f32 %v513, %v1003
        %v1005 = vand.u32 %v1004, 4294901760
        %1006 = vmatmul.mubr.f32.gmra.mrb[0].mxu0 %v1005
        %v1007 = vpop.f32.mrb[0].mxu0
        %v1008 = vadd.f32 %v883, %v1007
        %v1009 = vpop.f32.mrb[0].mxu0
        %1010 = vmatprep.mubr.f32.mxu0 0.0
        %v1011 = vand.u32 %v516, 4294901760
        %v1012 = vsub.f32 %v516, %v1011
        %v1013 = vand.u32 %v1012, 4294901760
        %1014 = vmatmul.mubr.f32.gmra.mrb[0].mxu0 %v1013
        %v1015 = vpop.f32.mrb[0].mxu0
        %v1016 = vadd.f32 %v890, %v1015
        %v1017 = vpop.f32.mrb[0].mxu0
        %1018 = vmatprep.mubr.f32.mxu0 0.0
        %v1019 = vand.u32 %v519, 4294901760
        %v1020 = vsub.f32 %v519, %v1019
        %v1021 = vand.u32 %v1020, 4294901760
        %1022 = vmatmul.mubr.f32.gmra.mrb[0].mxu0 %v1021
        %v1023 = vpop.f32.mrb[0].mxu0
        %v1024 = vadd.f32 %v897, %v1023
        %v1025 = vpop.f32.mrb[0].mxu0
        %1026 = vmatprep.mubr.f32.mxu0 0.0
        %v1027 = vand.u32 %v522, 4294901760
        %v1028 = vsub.f32 %v522, %v1027
        %v1029 = vand.u32 %v1028, 4294901760
        %1030 = vmatmul.mubr.f32.gmra.mrb[0].mxu0 %v1029
        %v1031 = vpop.f32.mrb[0].mxu0
        %v1032 = vadd.f32 %v904, %v1031
        %v1033 = vpop.f32.mrb[0].mxu0
        %1034 = vmatprep.mubr.f32.mxu0 0.0
        %v1035 = vand.u32 %v525, 4294901760
        %v1036 = vsub.f32 %v525, %v1035
        %v1037 = vand.u32 %v1036, 4294901760
        %1038 = vmatmul.mubr.f32.gmra.mrb[0].mxu0 %v1037
        %v1039 = vpop.f32.mrb[0].mxu0
        %v1040 = vadd.f32 %v911, %v1039
        %v1041 = vpop.f32.mrb[0].mxu0
        %1042 = vmatprep.mubr.f32.mxu0 0.0
        %v1043 = vand.u32 %v528, 4294901760
        %v1044 = vsub.f32 %v528, %v1043
        %v1045 = vand.u32 %v1044, 4294901760
        %1046 = vmatmul.mubr.f32.gmra.mrb[0].mxu0 %v1045
        %v1047 = vpop.f32.mrb[0].mxu0
        %v1048 = vadd.f32 %v918, %v1047
        %v1049 = vpop.f32.mrb[0].mxu0
        %1050 = vmatprep.mubr.f32.mxu0 0.0
        %v1051 = vand.u32 %v531, 4294901760
        %v1052 = vsub.f32 %v531, %v1051
        %v1053 = vand.u32 %v1052, 4294901760
        %1054 = vmatmul.mubr.f32.gmra.mrb[0].mxu0 %v1053
        %v1055 = vpop.f32.mrb[0].mxu0
        %v1056 = vadd.f32 %v925, %v1055
        %v1057 = vpop.f32.mrb[0].mxu0
        %1058 = vdwg.mxu0
        %1059 = vmatprep.subr.mxu0 0.0
        %v1060 = vand.u32 %v305, 4294901760
        %v1061 = vsub.f32 %v305, %v1060
        %v1062 = vand.u32 %v1061, 4294901760
        %1063 = vmatpush1.msra.mxu0 %v1062
        %1064 = vmatprep.subr.mxu0 0.0
        %v1065 = vand.u32 %v306, 4294901760
        %v1066 = vsub.f32 %v306, %v1065
        %v1067 = vand.u32 %v1066, 4294901760
        %1068 = vmatpush1.msra.mxu0 %v1067
        %1069 = vmatprep.subr.mxu0 0.0
        %1070 = vmatpush1.msra.mxu0 0.0
        %1071 = vmatprep.subr.mxu0 0.0
        %1072 = vmatpush1.msra.mxu0 0.0
        %1073 = vmatprep.subr.mxu0 0.0
        %1074 = vmatpush1.msra.mxu0 0.0
        %1075 = vmatprep.subr.mxu0 0.0
        %1076 = vmatpush1.msra.mxu0 0.0
        %1077 = vmatprep.subr.mxu0 0.0
        %1078 = vmatpush1.msra.mxu0 0.0
        %1079 = vmatprep.subr.mxu0 0.0
        %1080 = vmatpush1.msra.mxu0 0.0
        %1081 = vmatprep.subr.mxu0 0.0
        %1082 = vmatpush1.msra.mxu0 0.0
        %1083 = vmatprep.subr.mxu0 0.0
        %1084 = vmatpush1.msra.mxu0 0.0
        %1085 = vmatprep.subr.mxu0 0.0
        %1086 = vmatpush1.msra.mxu0 0.0
        %1087 = vmatprep.subr.mxu0 0.0
        %1088 = vmatpush1.msra.mxu0 0.0
        %1089 = vmatprep.subr.mxu0 0.0
        %1090 = vmatpush1.msra.mxu0 0.0
        %1091 = vmatprep.subr.mxu0 0.0
        %1092 = vmatpush1.msra.mxu0 0.0
        %1093 = vmatprep.subr.mxu0 0.0
        %1094 = vmatpush1.msra.mxu0 0.0
        %1095 = vmatprep.subr.mxu0 0.0
        %1096 = vmatpush1.msra.mxu0 0.0
        %1097 = vmatprep.subr.mxu0 0.0
        %1098 = vmatpush1.msra.mxu0 0.0
        %1099 = vmatprep.subr.mxu0 0.0
        %1100 = vmatpush1.msra.mxu0 0.0
        %1101 = vmatprep.subr.mxu0 0.0
        %1102 = vmatpush1.msra.mxu0 0.0
        %1103 = vmatprep.subr.mxu0 0.0
        %1104 = vmatpush1.msra.mxu0 0.0
        %1105 = vmatprep.subr.mxu0 0.0
        %1106 = vmatpush1.msra.mxu0 0.0
        %1107 = vmatprep.subr.mxu0 0.0
        %1108 = vmatpush1.msra.mxu0 0.0
        %1109 = vmatprep.subr.mxu0 0.0
        %1110 = vmatpush1.msra.mxu0 0.0
        %1111 = vmatprep.subr.mxu0 0.0
        %1112 = vmatpush1.msra.mxu0 0.0
        %1113 = vmatprep.subr.mxu0 0.0
        %1114 = vmatpush1.msra.mxu0 0.0
        %1115 = vmatprep.subr.mxu0 0.0
        %1116 = vmatpush1.msra.mxu0 0.0
        %1117 = vmatprep.subr.mxu0 0.0
        %1118 = vmatpush1.msra.mxu0 0.0
        %1119 = vmatprep.subr.mxu0 0.0
        %1120 = vmatpush1.msra.mxu0 0.0
        %1121 = vmatprep.subr.mxu0 0.0
        %1122 = vmatpush1.msra.mxu0 0.0
        %1123 = vmatprep.subr.mxu0 0.0
        %1124 = vmatpush1.msra.mxu0 0.0
        %1125 = vmatprep.subr.mxu0 0.0
        %1126 = vmatpush1.msra.mxu0 0.0
        %1127 = vmatprep.subr.mxu0 0.0
        %1128 = vmatpush1.msra.mxu0 0.0
        %1129 = vmatprep.mubr.f32.mxu0 0.0
        %v1130 = vand.u32 %v510, 4294901760
        %1131 = vmatmul.mubr.f32.gmra.mrb[0].mxu0 %v1130
        %v1132 = vpop.f32.mrb[0].mxu0
        %v1133 = vadd.f32 %v1000, %v1132
        %v1134 = vpop.f32.mrb[0].mxu0
        %1135 = vmatprep.mubr.f32.mxu0 0.0
        %v1136 = vand.u32 %v513, 4294901760
        %1137 = vmatmul.mubr.f32.gmra.mrb[0].mxu0 %v1136
        %v1138 = vpop.f32.mrb[0].mxu0
        %v1139 = vadd.f32 %v1008, %v1138
        %v1140 = vpop.f32.mrb[0].mxu0
        %1141 = vmatprep.mubr.f32.mxu0 0.0
        %v1142 = vand.u32 %v516, 4294901760
        %1143 = vmatmul.mubr.f32.gmra.mrb[0].mxu0 %v1142
        %v1144 = vpop.f32.mrb[0].mxu0
        %v1145 = vadd.f32 %v1016, %v1144
        %v1146 = vpop.f32.mrb[0].mxu0
        %1147 = vmatprep.mubr.f32.mxu0 0.0
        %v1148 = vand.u32 %v519, 4294901760
        %1149 = vmatmul.mubr.f32.gmra.mrb[0].mxu0 %v1148
        %v1150 = vpop.f32.mrb[0].mxu0
        %v1151 = vadd.f32 %v1024, %v1150
        %v1152 = vpop.f32.mrb[0].mxu0
        %1153 = vmatprep.mubr.f32.mxu0 0.0
        %v1154 = vand.u32 %v522, 4294901760
        %1155 = vmatmul.mubr.f32.gmra.mrb[0].mxu0 %v1154
        %v1156 = vpop.f32.mrb[0].mxu0
        %v1157 = vadd.f32 %v1032, %v1156
        %v1158 = vpop.f32.mrb[0].mxu0
        %1159 = vmatprep.mubr.f32.mxu0 0.0
        %v1160 = vand.u32 %v525, 4294901760
        %1161 = vmatmul.mubr.f32.gmra.mrb[0].mxu0 %v1160
        %v1162 = vpop.f32.mrb[0].mxu0
        %v1163 = vadd.f32 %v1040, %v1162
        %v1164 = vpop.f32.mrb[0].mxu0
        %1165 = vmatprep.mubr.f32.mxu0 0.0
        %v1166 = vand.u32 %v528, 4294901760
        %1167 = vmatmul.mubr.f32.gmra.mrb[0].mxu0 %v1166
        %v1168 = vpop.f32.mrb[0].mxu0
        %v1169 = vadd.f32 %v1048, %v1168
        %v1170 = vpop.f32.mrb[0].mxu0
        %1171 = vmatprep.mubr.f32.mxu0 0.0
        %v1172 = vand.u32 %v531, 4294901760
        %1173 = vmatmul.mubr.f32.gmra.mrb[0].mxu0 %v1172
        %v1174 = vpop.f32.mrb[0].mxu0
        %v1175 = vadd.f32 %v1056, %v1174
        %v1176 = vpop.f32.mrb[0].mxu0
        %1177 = vdwg.mxu0
        %1178 = vmatprep.subr.mxu0 0.0
        %v1179 = vand.u32 %v305, 4294901760
        %1180 = vmatpush1.msra.mxu0 %v1179
        %1181 = vmatprep.subr.mxu0 0.0
        %v1182 = vand.u32 %v306, 4294901760
        %1183 = vmatpush1.msra.mxu0 %v1182
        %1184 = vmatprep.subr.mxu0 0.0
        %1185 = vmatpush1.msra.mxu0 0.0
        %1186 = vmatprep.subr.mxu0 0.0
        %1187 = vmatpush1.msra.mxu0 0.0
        %1188 = vmatprep.subr.mxu0 0.0
        %1189 = vmatpush1.msra.mxu0 0.0
        %1190 = vmatprep.subr.mxu0 0.0
        %1191 = vmatpush1.msra.mxu0 0.0
        %1192 = vmatprep.subr.mxu0 0.0
        %1193 = vmatpush1.msra.mxu0 0.0
        %1194 = vmatprep.subr.mxu0 0.0
        %1195 = vmatpush1.msra.mxu0 0.0
        %1196 = vmatprep.subr.mxu0 0.0
        %1197 = vmatpush1.msra.mxu0 0.0
        %1198 = vmatprep.subr.mxu0 0.0
        %1199 = vmatpush1.msra.mxu0 0.0
        %1200 = vmatprep.subr.mxu0 0.0
        %1201 = vmatpush1.msra.mxu0 0.0
        %1202 = vmatprep.subr.mxu0 0.0
        %1203 = vmatpush1.msra.mxu0 0.0
        %1204 = vmatprep.subr.mxu0 0.0
        %1205 = vmatpush1.msra.mxu0 0.0
        %1206 = vmatprep.subr.mxu0 0.0
        %1207 = vmatpush1.msra.mxu0 0.0
        %1208 = vmatprep.subr.mxu0 0.0
        %1209 = vmatpush1.msra.mxu0 0.0
        %1210 = vmatprep.subr.mxu0 0.0
        %1211 = vmatpush1.msra.mxu0 0.0
        %1212 = vmatprep.subr.mxu0 0.0
        %1213 = vmatpush1.msra.mxu0 0.0
        %1214 = vmatprep.subr.mxu0 0.0
        %1215 = vmatpush1.msra.mxu0 0.0
        %1216 = vmatprep.subr.mxu0 0.0
        %1217 = vmatpush1.msra.mxu0 0.0
        %1218 = vmatprep.subr.mxu0 0.0
        %1219 = vmatpush1.msra.mxu0 0.0
        %1220 = vmatprep.subr.mxu0 0.0
        %1221 = vmatpush1.msra.mxu0 0.0
        %1222 = vmatprep.subr.mxu0 0.0
        %1223 = vmatpush1.msra.mxu0 0.0
        %1224 = vmatprep.subr.mxu0 0.0
        %1225 = vmatpush1.msra.mxu0 0.0
        %1226 = vmatprep.subr.mxu0 0.0
        %1227 = vmatpush1.msra.mxu0 0.0
        %1228 = vmatprep.subr.mxu0 0.0
        %1229 = vmatpush1.msra.mxu0 0.0
        %1230 = vmatprep.subr.mxu0 0.0
        %1231 = vmatpush1.msra.mxu0 0.0
        %1232 = vmatprep.subr.mxu0 0.0
        %1233 = vmatpush1.msra.mxu0 0.0
        %1234 = vmatprep.subr.mxu0 0.0
        %1235 = vmatpush1.msra.mxu0 0.0
        %1236 = vmatprep.subr.mxu0 0.0
        %1237 = vmatpush1.msra.mxu0 0.0
        %1238 = vmatprep.subr.mxu0 0.0
        %1239 = vmatpush1.msra.mxu0 0.0
        %1240 = vmatprep.subr.mxu0 0.0
        %1241 = vmatpush1.msra.mxu0 0.0
        %1242 = vmatprep.subr.mxu0 0.0
        %1243 = vmatpush1.msra.mxu0 0.0
        %1244 = vmatprep.mubr.f32.mxu0 0.0
        %v1245 = vand.u32 %v510, 4294901760
        %1246 = vmatmul.mubr.f32.gmra.mrb[0].mxu0 %v1245
        %v1247 = vpop.f32.mrb[0].mxu0
        %v1248 = vadd.f32 %v1133, %v1247
        %v1249 = vpop.f32.mrb[0].mxu0
        %1250 = vmatprep.mubr.f32.mxu0 0.0
        %v1251 = vand.u32 %v513, 4294901760
        %1252 = vmatmul.mubr.f32.gmra.mrb[0].mxu0 %v1251
        %v1253 = vpop.f32.mrb[0].mxu0
        %v1254 = vadd.f32 %v1139, %v1253
        %v1255 = vpop.f32.mrb[0].mxu0
        %1256 = vmatprep.mubr.f32.mxu0 0.0
        %v1257 = vand.u32 %v516, 4294901760
        %1258 = vmatmul.mubr.f32.gmra.mrb[0].mxu0 %v1257
        %v1259 = vpop.f32.mrb[0].mxu0
        %v1260 = vadd.f32 %v1145, %v1259
        %v1261 = vpop.f32.mrb[0].mxu0
        %1262 = vmatprep.mubr.f32.mxu0 0.0
        %v1263 = vand.u32 %v519, 4294901760
        %1264 = vmatmul.mubr.f32.gmra.mrb[0].mxu0 %v1263
        %v1265 = vpop.f32.mrb[0].mxu0
        %v1266 = vadd.f32 %v1151, %v1265
        %v1267 = vpop.f32.mrb[0].mxu0
        %1268 = vmatprep.mubr.f32.mxu0 0.0
        %v1269 = vand.u32 %v522, 4294901760
        %1270 = vmatmul.mubr.f32.gmra.mrb[0].mxu0 %v1269
        %v1271 = vpop.f32.mrb[0].mxu0
        %v1272 = vadd.f32 %v1157, %v1271
        %v1273 = vpop.f32.mrb[0].mxu0
        %1274 = vmatprep.mubr.f32.mxu0 0.0
        %v1275 = vand.u32 %v525, 4294901760
        %1276 = vmatmul.mubr.f32.gmra.mrb[0].mxu0 %v1275
        %v1277 = vpop.f32.mrb[0].mxu0
        %v1278 = vadd.f32 %v1163, %v1277
        %v1279 = vpop.f32.mrb[0].mxu0
        %1280 = vmatprep.mubr.f32.mxu0 0.0
        %v1281 = vand.u32 %v528, 4294901760
        %1282 = vmatmul.mubr.f32.gmra.mrb[0].mxu0 %v1281
        %v1283 = vpop.f32.mrb[0].mxu0
        %v1284 = vadd.f32 %v1169, %v1283
        %v1285 = vpop.f32.mrb[0].mxu0
        %1286 = vmatprep.mubr.f32.mxu0 0.0
        %v1287 = vand.u32 %v531, 4294901760
        %1288 = vmatmul.mubr.f32.gmra.mrb[0].mxu0 %v1287
        %v1289 = vpop.f32.mrb[0].mxu0
        %v1290 = vadd.f32 %v1175, %v1289
        %v1291 = vpop.f32.mrb[0].mxu0
        %1292 = vdwg.mxu0
        %vm1293 = vcmask 64512
        %1294 = vst.msk [vmem:[%s294] sm:$0xff] %vm1293, %v1248
        %1295 = vst.msk [vmem:[%s294 + $0x8] sm:$0xff] %vm1293, %v1254
        %1296 = vst.msk [vmem:[%s294 + $0x10] sm:$0xff] %vm1293, %v1260
        %1297 = vst.msk [vmem:[%s294 + $0x18] sm:$0xff] %vm1293, %v1266
        %1298 = vst.msk [vmem:[%s294 + $0x20] sm:$0xff] %vm1293, %v1272
        %1299 = vst.msk [vmem:[%s294 + $0x28] sm:$0xff] %vm1293, %v1278
        %1300 = vst.msk [vmem:[%s294 + $0x30] sm:$0xff] %vm1293, %v1284
        %1301 = vst.msk [vmem:[%s294 + $0x38] sm:$0xff] %vm1293, %v1290
        %s1302 = sand.u32 %s143, 1
        %s1303 = scalar_lea.sflag [#allocation5], %s1302
        %s1304 = sand.u32 %s143, 1
        %s1305 = smul.addr %s1304, 64
        %s1306 = scalar_lea.vmem [#allocation13], %s1305
        // Predicated region
        $region75: #{tpu_custom_call.1} parent=39 // pred_check
          %p1307 = pneg %p153
        $region76: #{tpu_custom_call.1} parent=39 // pred_check_branch
          %1309 = sbr.rel (%p1307) target = $region78
        $region77: #{tpu_custom_call.1} parent=39 // pred_region
          %s1311 = ssub.s32 1024, 1024
          %1312 = vsyncadd %s1303, %s1311
          %s1313 = smul.addr %s25, 8
          %s1314 = smul.addr %s1313, 128
          %s1315 = scalar_lea.hbm %s5, %s1314
          %s1316 = sshll.u32 %s1306, 4
          %s1317 = int_to_ptr.vmem [resolvable:$true] %s1316
          %1322 = dma.vmem_to_hbm [thread:$0]  %s1317, 1024, %s1315, %s1303, 128, 128, 8
        $region78: #{tpu_custom_call.1} parent=39 // pred_fallthru
          _
      $region40: #{tpu_custom_call.1} parent=5 // pred_fallthru
        _
      %p1323 = scmp.le.s32.totalorder 2, %s20
      // Predicated region
      $region79: #{tpu_custom_call.1} parent=5 // pred_check
        %p1324 = pneg %p1323
      $region80: #{tpu_custom_call.1} parent=5 // pred_check_branch
        %1326 = sbr.rel (%p1324) target = $region82
      $region81: #{tpu_custom_call.1} parent=5 // pred_region
        %s1327 = ssub.s32 %s20, 2
        // Predicated region
        $region83: #{tpu_custom_call.1} parent=81 // pred_check
          %p1328 = pneg %p159
        $region84: #{tpu_custom_call.1} parent=81 // pred_check_branch
          %1330 = sbr.rel (%p1328) target = $region86
        $region85: #{tpu_custom_call.1} parent=81 // pred_region
          %s1331 = sand.u32 %s144, 1
          %s1332 = scalar_lea.sflag [#allocation5], %s1331
          %s1333 = sand.u32 %s144, 1
          %s1334 = smul.addr %s1333, 64
          %s1335 = scalar_lea.vmem [#allocation13], %s1334
          %1336 = dma.done %s1332, 1024
        $region86: #{tpu_custom_call.1} parent=81 // pred_fallthru
          _
      $region82: #{tpu_custom_call.1} parent=5 // pred_fallthru
        _
    $region6: #{tpu_custom_call.1} parent=1 // loop_footer
      %s24 = sadd.s32 1, %s20
    $region7: #{tpu_custom_call.1} parent=1 // loop_footer_branch
      %19 = sbr.rel target = $region3
    $region8: #{tpu_custom_call.1} parent=1 // loop_exit
      _
    %1337 = vsyncpa [#allocation4], 1
    %s1338 = scalar_lea.sflag [#allocation4], 1
    %1339 = vsyncpa %s1338, 1
    %1340 = vsyncpa [#allocation5], 1
    %s1341 = scalar_lea.sflag [#allocation5], 1
    %1342 = vsyncpa %s1341, 1
    %1343 = vsyncpa [#allocation6], 1
    %s1344 = scalar_lea.sflag [#allocation6], 1
    %1345 = vsyncpa %s1344, 1
    %1346 = vsyncpa [#allocation9], 1
    %1347 = vsyncpa [#allocation12], 1

</llo_original>
